<compile_context>
chip_gen: v7x
topology: tpu7x:2x2x1
jax: 0.10.0
libtpu: 0.0.40
codegen_flags: <defaults>
</compile_context>

<pallas_src>
import jax
import jax.numpy as jnp
from jax.experimental import pallas as pl
from jax.experimental.pallas import tpu as pltpu

N_FRAMEWORKS = 5
FRAMEWORK_NAMES = ("deontological", "utilitarian", "virtue", "narrative", "care")
GATE_PAD = 128  # gate logits padded to one full lane width


# --------------------------------------------------------------------------
# VMEM budgeting
# --------------------------------------------------------------------------
def _round_up(a, b):
    return ((a + b - 1) // b) * b


def _vmem_budget_and_limit():
    """Per-generation scoped-VMEM limit + working-set budget."""
    cap = None
    try:
        cap = pltpu.get_tpu_info().vmem_capacity_bytes
    except Exception:
        cap = None
    if not cap:
        cap = 64 * 1024 * 1024  # conservative (v7x per-TC) fallback
    limit = min(int(cap * 3 // 4), 100 * 1024 * 1024)   # headroom for compiler
    budget = int(limit * 4 // 5)
    return budget, limit


def _fused_plan(d, f5, in_item, out_item, fw_item, budget):
    """Largest M tile for the fully-resident-weight path, or None if the
    resident weights do not leave room for a useful (>=64 row) tile."""
    gp = GATE_PAD
    resident = in_item * (d * (f5 + gp) + (f5 + gp)      # wfg + bfg (Buffered(1))
                          + gp * f5                       # expand matrix
                          + f5 * d + d)                   # wc + bc
    per_row = (2 * in_item * d                            # x tile (double-buffered)
               + 2 * out_item * d                         # combined out tile
               + 2 * fw_item * f5                         # 5 framework out tiles
               + 4 * (f5 + gp)                            # z (f32)
               + 3 * 4 * gp                               # softmax temporaries
               + 4 * f5                                   # gate_exp (f32)
               + 4 * f5 + in_item * f5                    # weighted f32 + cd cast
               + 4 * d)                                   # combined f32
    avail = budget - resident
    if avail < 64 * per_row:                              # weights too big -> tile them
        return None
    return min(512, (avail // per_row) // 8 * 8)


def _tiled_plan(d, f, in_item, out_item, fw_item, budget):
    """M tile for the weight-tiled (per-framework) fallback path."""
    gp = GATE_PAD
    fixed = (in_item * (d * gp + gp + d)                  # wg, bg, bc (Buffered(1))
             + 2 * in_item * (d * f + f + f * d))         # wf/bf/wc tiles (x2 buffers)
    per_row = (2 * in_item * d + 2 * out_item * d
               + 2 * fw_item * f * N_FRAMEWORKS
               + 4 * gp + 4 * d                           # gate + acc scratch
               + 4 * f + 4 * f + in_item * f              # fw_tile f32, weighted, cast
               + 4 * d)
    avail = budget - fixed
    if avail <= 8 * per_row:
        return 8
    return max(8, min(512, (avail // per_row) // 8 * 8))


def _finalize_tm(tm, m):
    tm = max(8, min(int(tm), 512))
    tm = min(tm, _round_up(m, 8))
    # Split M into >=2 grid steps so ("parallel",) shards both v7x TensorCores.
    if tm >= m and m > 8:
        tm = _round_up(-(-m // 2), 8)
    return tm


def _spec(shape, index_map, buffered=None):
    """BlockSpec helper; Buffered(1) for VMEM-resident (constant-index) weights."""
    if buffered is not None:
        try:
            return pl.BlockSpec(shape, index_map, pipeline_mode=pl.Buffered(buffered))
        except (TypeError, AttributeError):
            pass
    return pl.BlockSpec(shape, index_map)


# --------------------------------------------------------------------------
# Kernels
# --------------------------------------------------------------------------
def _fused_kernel(x_ref, wfg_ref, bfg_ref, expand_ref, wc_ref, bc_ref,
                  comb_ref, *fw_refs):
    """Fully VMEM-resident weights; one wide matmul covers frameworks + gate."""
    f5 = expand_ref.shape[-1]
    f = f5 // N_FRAMEWORKS
    x = x_ref[...]                                                    # (TM, D)

    # Frameworks + gate in ONE MXU call.
    z = jnp.dot(x, wfg_ref[...], preferred_element_type=jnp.float32)
    z = z + bfg_ref[...].astype(jnp.float32)                          # (TM, 5F+128)
    fw_all = z[:, :f5]                                                # (TM, 5F)
    logits = z[:, f5:]                                                # (TM, 128)

    # Softmax over 5 frameworks (pad columns carry -1e30 bias -> exactly 0).
    m = jnp.max(logits, axis=-1, keepdims=True)
    e = jnp.exp(logits - m)
    gate = e * pl.reciprocal(jnp.sum(e, axis=-1, keepdims=True), approx=True)

    # Expand gate to per-column weights on the MXU (0/1 matrix), one VPU mul.
    gate_exp = jnp.dot(gate.astype(expand_ref.dtype), expand_ref[...],
                       preferred_element_type=jnp.float32)            # (TM, 5F)
    weighted = fw_all * gate_exp

    comb = jnp.dot(weighted.astype(wc_ref.dtype), wc_ref[...],
                   preferred_element_type=jnp.float32)
    comb_ref[...] = (comb + bc_ref[...].astype(jnp.float32)).astype(comb_ref.dtype)

    # Per-framework outputs written as separate lane-aligned streams.
    for k, fw_ref in enumerate(fw_refs):
        fw_ref[...] = fw_all[:, k * f:(k + 1) * f].astype(fw_ref.dtype)


def _tiled_kernel(x_ref, wg_ref, bg_ref, wf_ref, bf_ref, wc_ref, bc_ref,
                  comb_ref, *rest):
    """Weight-tiled fallback: grid=(M tiles, 5 frameworks); wf/wc tiled along
    the 5F axis, f32 combined accumulator in scratch."""
    gate_scr, acc_scr = rest[-2], rest[-1]
    fw_refs = rest[:-2]
    j = pl.program_id(1)
    nt = pl.num_programs(1)
    x = x_ref[...]                                                    # (TM, D)

    @pl.when(j == 0)
    def _():
        logits = jnp.dot(x, wg_ref[...], preferred_element_type=jnp.float32)
        logits = logits + bg_ref[...].astype(jnp.float32)             # (TM, 128)
        m = jnp.max(logits, axis=-1, keepdims=True)
        e = jnp.exp(logits - m)
        gate_scr[...] = e * pl.reciprocal(jnp.sum(e, axis=-1, keepdims=True),
                                          approx=True)
        acc_scr[...] = jnp.zeros_like(acc_scr)

    fw_tile = jnp.dot(x, wf_ref[...], preferred_element_type=jnp.float32)
    fw_tile = fw_tile + bf_ref[...].astype(jnp.float32)               # (TM, F)

    # gate column j (avoid dynamic lane slicing: masked lane reduce on XLU).
    lane = jax.lax.broadcasted_iota(jnp.int32, gate_scr.shape, 1)
    gate_j = jnp.sum(jnp.where(lane == j, gate_scr[...], 0.0),
                     axis=-1, keepdims=True)                          # (TM, 1)

    weighted = fw_tile * gate_j
    acc_scr[...] += jnp.dot(weighted.astype(wc_ref.dtype), wc_ref[...],
                            preferred_element_type=jnp.float32)

    def _write(k, ref):
        @pl.when(j == k)
        def _():
            ref[...] = fw_tile.astype(ref.dtype)
    for k, ref in enumerate(fw_refs):
        _write(k, ref)

    @pl.when(j == nt - 1)
    def _():
        comb_ref[...] = (acc_scr[...] + bc_ref[...].astype(jnp.float32)
                         ).astype(comb_ref.dtype)


# --------------------------------------------------------------------------
# Wrapper
# --------------------------------------------------------------------------
def moral_framework_embedding(x, params, *, compute_dtype=jnp.bfloat16,
                              out_dtype=None, return_framework_outputs=True,
                              weight_tiling=None):
    """x: (B, S, D) -> (combined (B,S,D), dict of (B,S,F)) like the PyTorch module."""
    B, S, D = x.shape
    M = B * S
    F5 = params["wf"].shape[-1]
    F = F5 // N_FRAMEWORKS

    cd = jnp.dtype(compute_dtype)
    od = jnp.dtype(out_dtype) if out_dtype is not None else cd
    fw_dt = cd
    fw_item = fw_dt.itemsize if return_framework_outputs else 0

    budget, limit = _vmem_budget_and_limit()
    x2 = x.reshape(M, D).astype(cd)

    fused_tm = _fused_plan(D, F5, cd.itemsize, od.itemsize, fw_item, budget)
    use_tiled = (fused_tm is None) if weight_tiling is None else bool(weight_tiling)

    if not use_tiled:
        tm = _finalize_tm(fused_tm if fused_tm is not None else 128, M)
        grid = (pl.cdiv(M, tm),)
        wfg = params["wfg"].astype(cd)
        bfg = params["bfg"].astype(cd)
        expand = params["expand"].astype(cd)
        wc = params["wc"].astype(cd)
        bc = params["bc"].astype(cd)

        in_specs = [
            _spec((tm, D), lambda i: (i, 0)),                        # x (streamed)
            _spec((D, F5 + GATE_PAD), lambda i: (0, 0), buffered=1),  # wfg resident
            _spec((1, F5 + GATE_PAD), lambda i: (0, 0), buffered=1),  # bfg
            _spec((GATE_PAD, F5), lambda i: (0, 0), buffered=1),      # expand
            _spec((F5, D), lambda i: (0, 0), buffered=1),             # wc
            _spec((1, D), lambda i: (0, 0), buffered=1),              # bc
        ]
        out_specs = [pl.BlockSpec((tm, D), lambda i: (i, 0))]
        out_shape = [jax.ShapeDtypeStruct((M, D), od)]
        if return_framework_outputs:
            out_specs += [pl.BlockSpec((tm, F), lambda i: (i, 0))] * N_FRAMEWORKS
            out_shape += [jax.ShapeDtypeStruct((M, F), fw_dt)] * N_FRAMEWORKS

        outs = pl.pallas_call(
            _fused_kernel,
            grid=grid,
            in_specs=in_specs,
            out_specs=tuple(out_specs),
            out_shape=tuple(out_shape),
            compiler_params=pltpu.CompilerParams(
                dimension_semantics=("parallel",),
                vmem_limit_bytes=limit),
        )(x2, wfg, bfg, expand, wc, bc)
    else:
        assert F % 128 == 0, "weight-tiled path requires framework_dim % 128 == 0"
        tm = _finalize_tm(_tiled_plan(D, F, cd.itemsize, od.itemsize, fw_item, budget), M)
        grid = (pl.cdiv(M, tm), N_FRAMEWORKS)
        wg = params["wg"].astype(cd)
        bg = params["bg"].astype(cd)
        wf = params["wf"].astype(cd)
        bf = params["bf"].astype(cd)
        wc = params["wc"].astype(cd)
        bc = params["bc"].astype(cd)

        in_specs = [
            _spec((tm, D), lambda i, j: (i, 0)),                      # x (held across j)
            _spec((D, GATE_PAD), lambda i, j: (0, 0), buffered=1),    # wg resident
            _spec((1, GATE_PAD), lambda i, j: (0, 0), buffered=1),    # bg
            _spec((D, F), lambda i, j: (0, j)),                       # wf tile (N-tiled)
            _spec((1, F), lambda i, j: (0, j)),                       # bf tile
            _spec((F, D), lambda i, j: (j, 0)),                       # wc tile (K-tiled)
            _spec((1, D), lambda i, j: (0, 0), buffered=1),           # bc
        ]
        out_specs = [pl.BlockSpec((tm, D), lambda i, j: (i, 0))]
        out_shape = [jax.ShapeDtypeStruct((M, D), od)]
        if return_framework_outputs:
            out_specs += [pl.BlockSpec((tm, F), lambda i, j: (i, 0))] * N_FRAMEWORKS
            out_shape += [jax.ShapeDtypeStruct((M, F), fw_dt)] * N_FRAMEWORKS

        outs = pl.pallas_call(
            _tiled_kernel,
            grid=grid,
            in_specs=in_specs,
            out_specs=tuple(out_specs),
            out_shape=tuple(out_shape),
            scratch_shapes=[pltpu.VMEM((tm, GATE_PAD), jnp.float32),  # gate
                            pltpu.VMEM((tm, D), jnp.float32)],        # combined acc
            compiler_params=pltpu.CompilerParams(
                dimension_semantics=("parallel", "arbitrary"),
                vmem_limit_bytes=limit),
        )(x2, wg, bg, wf, bf, wc, bc)

    outs = outs if isinstance(outs, (tuple, list)) else (outs,)
    combined = outs[0].reshape(B, S, D)
    if return_framework_outputs:
        framework_outputs = {name: outs[1 + i].reshape(B, S, F)
                             for i, name in enumerate(FRAMEWORK_NAMES)}
    else:
        framework_outputs = None
    return combined, framework_outputs


# --------------------------------------------------------------------------
# Params / reference
# --------------------------------------------------------------------------
def init_params(key, input_dim, framework_dim):
    """nn.Linear-style U(-1/sqrt(fan_in), 1/sqrt(fan_in)) init, kernel layouts."""
    D, F = input_dim, framework_dim
    F5 = N_FRAMEWORKS * F
    ks = jax.random.split(key, 6)

    def u(k, shape, fan_in):
        bound = 1.0 / jnp.sqrt(fan_in)
        return jax.random.uniform(k, shape, jnp.float32, -bound, bound)

    # gate: Linear(D, 5), lane-padded to 128 outputs; pad bias = -1e30 so the
    # padded softmax columns are exactly 0.
    wg_raw = u(ks[0], (D, N_FRAMEWORKS), D)
    bg_raw = u(ks[1], (1, N_FRAMEWORKS), D)
    wg = jnp.zeros((D, GATE_PAD), jnp.float32).at[:, :N_FRAMEWORKS].set(wg_raw)
    bg = jnp.full((1, GATE_PAD), -1e30, jnp.float32).at[:, :N_FRAMEWORKS].set(bg_raw)

    wf = u(ks[2], (D, F5), D)     # 5 framework Linear(D, F), column-stacked
    bf = u(ks[3], (1, F5), D)
    wc = u(ks[4], (F5, D), F5)    # combiner Linear(5F, D)
    bc = u(ks[5], (1, D), F5)

    # fused (framework ++ gate) layout for the single-matmul path
    wfg = jnp.concatenate([wf, wg], axis=1)               # (D, 5F+128)
    bfg = jnp.concatenate([bf, bg], axis=1)                # (1, 5F+128)
    # constant 0/1 expansion: gate (.,128) @ expand -> per-column gate (.,5F)
    expand = (jnp.arange(GATE_PAD)[:, None]
              == jnp.repeat(jnp.arange(N_FRAMEWORKS), F)[None, :]).astype(jnp.float32)

    return dict(wg=wg, bg=bg, wg_raw=wg_raw, bg_raw=bg_raw,
                wf=wf, bf=bf, wc=wc, bc=bc,
                wfg=wfg, bfg=bfg, expand=expand)


def reference_forward(x, params):
    """Pure-JAX reference matching the PyTorch module exactly."""
    F = params["wf"].shape[-1] // N_FRAMEWORKS
    logits = x @ params["wg_raw"] + params["bg_raw"][0]
    gate = jax.nn.softmax(logits, axis=-1)
    fw = {}
    weighted = []
    for i, name in enumerate(FRAMEWORK_NAMES):
        o = x @ params["wf"][:, i * F:(i + 1) * F] + params["bf"][0, i * F:(i + 1) * F]
        fw[name] = o
        weighted.append(o * gate[..., i:i + 1])
    cat = jnp.concatenate(weighted, axis=-1)
    combined = cat @ params["wc"] + params["bc"][0]
    return combined, fw


if __name__ == "__main__":
    B, S, D_IN, F_DIM = 2, 8, 32, 128

    key = jax.random.PRNGKey(0)
    k_params, k_x = jax.random.split(key)
    params = init_params(k_params, D_IN, F_DIM)
    x = jax.random.normal(k_x, (B, S, D_IN), jnp.float32)

    ref_combined, ref_fw = reference_forward(x, params)

    # Fused path, f32 compute + f32 output: tight numerical check.
    comb32, fw32 = moral_framework_embedding(x, params, compute_dtype=jnp.float32)
    comb32 = jax.block_until_ready(comb32)
    assert comb32.shape == (B, S, D_IN) and comb32.dtype == jnp.float32
    assert jnp.allclose(comb32, ref_combined, atol=5e-3, rtol=5e-3)
    for name in FRAMEWORK_NAMES:
        assert fw32[name].shape == (B, S, F_DIM)
        assert jnp.allclose(fw32[name].astype(jnp.float32), ref_fw[name],
                            atol=1e-5, rtol=1e-5)

    # Fused path, default bf16 compute + bf16 output (perf path).
    comb16, fw16 = moral_framework_embedding(x, params)
    comb16 = jax.block_until_ready(comb16)
    assert jnp.allclose(comb16.astype(jnp.float32), ref_combined, atol=5e-2, rtol=5e-2)
    for name in FRAMEWORK_NAMES:
        assert jnp.allclose(fw16[name].astype(jnp.float32), ref_fw[name],
                            atol=5e-2, rtol=5e-2)

    # Weight-tiled fallback path (forced here; auto-selected for large D/F).
    combt, fwt = moral_framework_embedding(x, params, compute_dtype=jnp.float32,
                                           weight_tiling=True)
    combt = jax.block_until_ready(combt)
    assert jnp.allclose(combt, ref_combined, atol=5e-3, rtol=5e-3)
    for name in FRAMEWORK_NAMES:
        assert jnp.allclose(fwt[name].astype(jnp.float32), ref_fw[name],
                            atol=1e-5, rtol=1e-5)

    # Combined-only variants (skip the per-framework HBM writeback entirely).
    comb_only, none_fw = moral_framework_embedding(
        x, params, return_framework_outputs=False)
    comb_only = jax.block_until_ready(comb_only)
    assert none_fw is None
    assert jnp.allclose(comb_only.astype(jnp.float32), ref_combined,
                        atol=5e-2, rtol=5e-2)

    combt_only, _ = moral_framework_embedding(
        x, params, return_framework_outputs=False, weight_tiling=True)
    combt_only = jax.block_until_ready(combt_only)
    assert jnp.allclose(combt_only.astype(jnp.float32), ref_combined,
                        atol=5e-2, rtol=5e-2)

    print("KERNEL_OK")
</pallas_src>

<mosaic_0001>
module attributes {stable_mosaic.version = 11 : i64} {
  func.func @_fused_kernel(%arg0: i32, %arg1: memref<8x32xf32, #tpu.memory_space<vmem>>, %arg2: memref<32x768xf32, #tpu.memory_space<vmem>>, %arg3: memref<1x768xf32, #tpu.memory_space<vmem>>, %arg4: memref<128x640xf32, #tpu.memory_space<vmem>>, %arg5: memref<640x32xf32, #tpu.memory_space<vmem>>, %arg6: memref<1x32xf32, #tpu.memory_space<vmem>>, %arg7: memref<8x32xf32, #tpu.memory_space<vmem>>, %arg8: memref<8x128xf32, #tpu.memory_space<vmem>>, %arg9: memref<8x128xf32, #tpu.memory_space<vmem>>, %arg10: memref<8x128xf32, #tpu.memory_space<vmem>>, %arg11: memref<8x128xf32, #tpu.memory_space<vmem>>, %arg12: memref<8x128xf32, #tpu.memory_space<vmem>>) attributes {dimension_semantics = [#tpu.dimension_semantics<parallel>], iteration_bounds = array<i64: 2>, scalar_prefetch = 0 : i64, scratch_operands = 0 : i64, tpu.core_type = #tpu.core_type<tc>, window_params = [{transform_indices = @transform_0, window_bounds = array<i64: 8, 32>}, {pipeline_mode = #tpu.pipeline_mode<synchronous>, transform_indices = @transform_1, window_bounds = array<i64: 32, 768>}, {pipeline_mode = #tpu.pipeline_mode<synchronous>, transform_indices = @transform_2, window_bounds = array<i64: 1, 768>}, {pipeline_mode = #tpu.pipeline_mode<synchronous>, transform_indices = @transform_3, window_bounds = array<i64: 128, 640>}, {pipeline_mode = #tpu.pipeline_mode<synchronous>, transform_indices = @transform_4, window_bounds = array<i64: 640, 32>}, {pipeline_mode = #tpu.pipeline_mode<synchronous>, transform_indices = @transform_5, window_bounds = array<i64: 1, 32>}, {transform_indices = @transform_6, window_bounds = array<i64: 8, 32>}, {transform_indices = @transform_7, window_bounds = array<i64: 8, 128>}, {transform_indices = @transform_8, window_bounds = array<i64: 8, 128>}, {transform_indices = @transform_9, window_bounds = array<i64: 8, 128>}, {transform_indices = @transform_10, window_bounds = array<i64: 8, 128>}, {transform_indices = @transform_11, window_bounds = array<i64: 8, 128>}]} {
    %c0 = arith.constant 0 : index
    %c0_0 = arith.constant 0 : index
    %0 = vector.load %arg1[%c0, %c0_0] : memref<8x32xf32, #tpu.memory_space<vmem>>, vector<8x32xf32>
    %c0_1 = arith.constant 0 : index
    %c0_2 = arith.constant 0 : index
    %1 = vector.load %arg2[%c0_1, %c0_2] : memref<32x768xf32, #tpu.memory_space<vmem>>, vector<32x768xf32>
    %cst = arith.constant dense<0.000000e+00> : vector<8x768xf32>
    %2 = tpu.matmul %0, %1, %cst {dimension_numbers = #tpu.dot_dimension_numbers<[1], [0], [0], [1], [0, 0, 1, 1], [], []>} : vector<8x32xf32>, vector<32x768xf32>, vector<8x768xf32> -> vector<8x768xf32>
    %c0_3 = arith.constant 0 : index
    %c0_4 = arith.constant 0 : index
    %3 = vector.load %arg3[%c0_3, %c0_4] : memref<1x768xf32, #tpu.memory_space<vmem>>, vector<1x768xf32>
    %4 = vector.broadcast %3 : vector<1x768xf32> to vector<8x768xf32>
    %5 = arith.addf %2, %4 : vector<8x768xf32>
    %6 = vector.extract_strided_slice %5 {offsets = [0, 0], sizes = [8, 640], strides = [1, 1]} : vector<8x768xf32> to vector<8x640xf32>
    %7 = vector.extract_strided_slice %5 {offsets = [0, 640], sizes = [8, 128], strides = [1, 1]} : vector<8x768xf32> to vector<8x128xf32>
    %cst_5 = arith.constant dense<0xFF800000> : vector<8xf32>
    %8 = vector.multi_reduction <maximumf>, %7, %cst_5 [1] : vector<8x128xf32> to vector<8xf32>
    %9 = vector.shape_cast %8 : vector<8xf32> to vector<8x1xf32>
    %10 = vector.broadcast %9 : vector<8x1xf32> to vector<8x128xf32>
    %11 = arith.subf %7, %10 : vector<8x128xf32>
    %12 = math.exp %11 : vector<8x128xf32>
    %cst_6 = arith.constant dense<0.000000e+00> : vector<8xf32>
    %13 = vector.multi_reduction <add>, %12, %cst_6 [1] : vector<8x128xf32> to vector<8xf32>
    %14 = vector.shape_cast %13 : vector<8xf32> to vector<8x1xf32>
    %15 = tpu.reciprocal %14 {approx = true} : vector<8x1xf32> -> vector<8x1xf32>
    %16 = vector.broadcast %15 : vector<8x1xf32> to vector<8x128xf32>
    %17 = arith.mulf %12, %16 : vector<8x128xf32>
    %c0_7 = arith.constant 0 : index
    %c0_8 = arith.constant 0 : index
    %18 = vector.load %arg4[%c0_7, %c0_8] : memref<128x640xf32, #tpu.memory_space<vmem>>, vector<128x640xf32>
    %cst_9 = arith.constant dense<0.000000e+00> : vector<8x640xf32>
    %19 = tpu.matmul %17, %18, %cst_9 {dimension_numbers = #tpu.dot_dimension_numbers<[1], [0], [0], [1], [0, 0, 1, 1], [], []>} : vector<8x128xf32>, vector<128x640xf32>, vector<8x640xf32> -> vector<8x640xf32>
    %20 = arith.mulf %6, %19 : vector<8x640xf32>
    %c0_10 = arith.constant 0 : index
    %c0_11 = arith.constant 0 : index
    %21 = vector.load %arg5[%c0_10, %c0_11] : memref<640x32xf32, #tpu.memory_space<vmem>>, vector<640x32xf32>
    %cst_12 = arith.constant dense<0.000000e+00> : vector<8x32xf32>
    %22 = tpu.matmul %20, %21, %cst_12 {dimension_numbers = #tpu.dot_dimension_numbers<[1], [0], [0], [1], [0, 0, 1, 1], [], []>} : vector<8x640xf32>, vector<640x32xf32>, vector<8x32xf32> -> vector<8x32xf32>
    %c0_13 = arith.constant 0 : index
    %c0_14 = arith.constant 0 : index
    %23 = vector.load %arg6[%c0_13, %c0_14] : memref<1x32xf32, #tpu.memory_space<vmem>>, vector<1x32xf32>
    %24 = vector.broadcast %23 : vector<1x32xf32> to vector<8x32xf32>
    %25 = arith.addf %22, %24 : vector<8x32xf32>
    %c0_15 = arith.constant 0 : index
    %c0_16 = arith.constant 0 : index
    %26 = vector.load %arg7[%c0_15, %c0_16] : memref<8x32xf32, #tpu.memory_space<vmem>>, vector<8x32xf32>
    tpu.vector_store %arg7[%c0_15, %c0_16], %25 {strides = array<i32>} : memref<8x32xf32, #tpu.memory_space<vmem>>, vector<8x32xf32>,
    %27 = vector.extract_strided_slice %6 {offsets = [0, 0], sizes = [8, 128], strides = [1, 1]} : vector<8x640xf32> to vector<8x128xf32>
    %c0_17 = arith.constant 0 : index
    %c0_18 = arith.constant 0 : index
    %28 = vector.load %arg8[%c0_17, %c0_18] : memref<8x128xf32, #tpu.memory_space<vmem>>, vector<8x128xf32>
    tpu.vector_store %arg8[%c0_17, %c0_18], %27 {strides = array<i32>} : memref<8x128xf32, #tpu.memory_space<vmem>>, vector<8x128xf32>,
    %29 = vector.extract_strided_slice %6 {offsets = [0, 128], sizes = [8, 128], strides = [1, 1]} : vector<8x640xf32> to vector<8x128xf32>
    %c0_19 = arith.constant 0 : index
    %c0_20 = arith.constant 0 : index
    %30 = vector.load %arg9[%c0_19, %c0_20] : memref<8x128xf32, #tpu.memory_space<vmem>>, vector<8x128xf32>
    tpu.vector_store %arg9[%c0_19, %c0_20], %29 {strides = array<i32>} : memref<8x128xf32, #tpu.memory_space<vmem>>, vector<8x128xf32>,
    %31 = vector.extract_strided_slice %6 {offsets = [0, 256], sizes = [8, 128], strides = [1, 1]} : vector<8x640xf32> to vector<8x128xf32>
    %c0_21 = arith.constant 0 : index
    %c0_22 = arith.constant 0 : index
    %32 = vector.load %arg10[%c0_21, %c0_22] : memref<8x128xf32, #tpu.memory_space<vmem>>, vector<8x128xf32>
    tpu.vector_store %arg10[%c0_21, %c0_22], %31 {strides = array<i32>} : memref<8x128xf32, #tpu.memory_space<vmem>>, vector<8x128xf32>,
    %33 = vector.extract_strided_slice %6 {offsets = [0, 384], sizes = [8, 128], strides = [1, 1]} : vector<8x640xf32> to vector<8x128xf32>
    %c0_23 = arith.constant 0 : index
    %c0_24 = arith.constant 0 : index
    %34 = vector.load %arg11[%c0_23, %c0_24] : memref<8x128xf32, #tpu.memory_space<vmem>>, vector<8x128xf32>
    tpu.vector_store %arg11[%c0_23, %c0_24], %33 {strides = array<i32>} : memref<8x128xf32, #tpu.memory_space<vmem>>, vector<8x128xf32>,
    %35 = vector.extract_strided_slice %6 {offsets = [0, 512], sizes = [8, 128], strides = [1, 1]} : vector<8x640xf32> to vector<8x128xf32>
    %c0_25 = arith.constant 0 : index
    %c0_26 = arith.constant 0 : index
    %36 = vector.load %arg12[%c0_25, %c0_26] : memref<8x128xf32, #tpu.memory_space<vmem>>, vector<8x128xf32>
    tpu.vector_store %arg12[%c0_25, %c0_26], %35 {strides = array<i32>} : memref<8x128xf32, #tpu.memory_space<vmem>>, vector<8x128xf32>,
    return
  }
  func.func @transform_0(%arg0: i32) -> (i32, i32) {
    %c0_i32 = arith.constant 0 : i32
    %c0_i32_0 = arith.constant 0 : i32
    return %arg0, %c0_i32 : i32, i32
  }
  func.func @transform_1(%arg0: i32) -> (i32, i32) {
    %c0_i32 = arith.constant 0 : i32
    %c0_i32_0 = arith.constant 0 : i32
    %c0_i32_1 = arith.constant 0 : i32
    return %c0_i32, %c0_i32_0 : i32, i32
  }
  func.func @transform_2(%arg0: i32) -> (i32, i32) {
    %c0_i32 = arith.constant 0 : i32
    %c0_i32_0 = arith.constant 0 : i32
    %c0_i32_1 = arith.constant 0 : i32
    return %c0_i32, %c0_i32_0 : i32, i32
  }
  func.func @transform_3(%arg0: i32) -> (i32, i32) {
    %c0_i32 = arith.constant 0 : i32
    %c0_i32_0 = arith.constant 0 : i32
    %c0_i32_1 = arith.constant 0 : i32
    return %c0_i32, %c0_i32_0 : i32, i32
  }
  func.func @transform_4(%arg0: i32) -> (i32, i32) {
    %c0_i32 = arith.constant 0 : i32
    %c0_i32_0 = arith.constant 0 : i32
    %c0_i32_1 = arith.constant 0 : i32
    return %c0_i32, %c0_i32_0 : i32, i32
  }
  func.func @transform_5(%arg0: i32) -> (i32, i32) {
    %c0_i32 = arith.constant 0 : i32
    %c0_i32_0 = arith.constant 0 : i32
    %c0_i32_1 = arith.constant 0 : i32
    return %c0_i32, %c0_i32_0 : i32, i32
  }
  func.func @transform_6(%arg0: i32) -> (i32, i32) {
    %c0_i32 = arith.constant 0 : i32
    %c0_i32_0 = arith.constant 0 : i32
    return %arg0, %c0_i32 : i32, i32
  }
  func.func @transform_7(%arg0: i32) -> (i32, i32) {
    %c0_i32 = arith.constant 0 : i32
    %c0_i32_0 = arith.constant 0 : i32
    return %arg0, %c0_i32 : i32, i32
  }
  func.func @transform_8(%arg0: i32) -> (i32, i32) {
    %c0_i32 = arith.constant 0 : i32
    %c0_i32_0 = arith.constant 0 : i32
    return %arg0, %c0_i32 : i32, i32
  }
  func.func @transform_9(%arg0: i32) -> (i32, i32) {
    %c0_i32 = arith.constant 0 : i32
    %c0_i32_0 = arith.constant 0 : i32
    return %arg0, %c0_i32 : i32, i32
  }
  func.func @transform_10(%arg0: i32) -> (i32, i32) {
    %c0_i32 = arith.constant 0 : i32
    %c0_i32_0 = arith.constant 0 : i32
    return %arg0, %c0_i32 : i32, i32
  }
  func.func @transform_11(%arg0: i32) -> (i32, i32) {
    %c0_i32 = arith.constant 0 : i32
    %c0_i32_0 = arith.constant 0 : i32
    return %arg0, %c0_i32 : i32, i32
  }
}

</mosaic_0001>

<llo_original>
// kernel: tpu_custom_call.1
$region0: #{tpu_custom_call.1}
  #allocation0 [shape = 'u32[]', space=smem, size = 0x4, offset = 0x4, fixed_abs, tag = 'smem constant byte address 0x4 - core index']
  #allocation1 [shape = 'u32[144,128]{1,0:T(1,128)}', space=vmem, size = 0x12000, scoped, tag = 'internal scratch']
  %s0 = inlined_call_operand.vmem [shape: f32[16,32], index: 0, kind: input, shape index: {}]
  %s1 = inlined_call_operand.hbm [shape: f32[32,768], index: 1, kind: input, shape index: {}]
  %s2 = inlined_call_operand.vmem [shape: f32[1,768], index: 2, kind: input, shape index: {}]
  %s3 = inlined_call_operand.vmem [shape: f32[128,640], index: 3, kind: input, shape index: {}]
  %s4 = inlined_call_operand.vmem [shape: f32[640,32], index: 4, kind: input, shape index: {}]
  %s5 = inlined_call_operand.vmem [shape: f32[1,32], index: 5, kind: input, shape index: {}]
  %s6 = inlined_call_operand.hbm [shape: f32[16,32], index: 6, kind: output, shape index: {0}]
  %s7 = inlined_call_operand.hbm [shape: f32[16,128], index: 7, kind: output, shape index: {1}]
  %s8 = inlined_call_operand.hbm [shape: f32[16,128], index: 8, kind: output, shape index: {2}]
  %s9 = inlined_call_operand.hbm [shape: f32[16,128], index: 9, kind: output, shape index: {3}]
  %s10 = inlined_call_operand.hbm [shape: f32[16,128], index: 10, kind: output, shape index: {4}]
  %s11 = inlined_call_operand.hbm [shape: f32[16,128], index: 11, kind: output, shape index: {5}]
  %12 = xla_tuple %s6, %s7, %s8, %s9, %s10, %s11
  %s13 = sld [smem:[#allocation0]]
  $region101: #{tpu_custom_call.1} parent=0
    _
  %s15 = ssub.s32 1, %s13
  %s16 = scalar_select 0, %s15, %s13
  $region1: #{tpu_custom_call.1} parent=0
    #allocation2 [shape = 'u8[98304]{0}', space=vmem, size = 0x18000, scoped, tag = 'input window, operand 1, single buffered']
    #allocation3 [shape = 's32[2]{0}', space=sflag, size = 0x8, scoped, tag = 'scoped memory for tpu_custom_call.1']
    #allocation4 [shape = 's32[2]{0}', space=sflag, size = 0x8, scoped, tag = 'scoped memory for tpu_custom_call.1']
    #allocation5 [shape = 'u8[8192]{0}', space=vmem, size = 0x2000, scoped, tag = 'output window, operand 0']
    #allocation6 [shape = 'u8[8192]{0}', space=vmem, size = 0x2000, scoped, tag = 'output window, operand 1']
    #allocation7 [shape = 's32[2]{0}', space=sflag, size = 0x8, scoped, tag = 'scoped memory for tpu_custom_call.1']
    #allocation8 [shape = 'u8[8192]{0}', space=vmem, size = 0x2000, scoped, tag = 'output window, operand 2']
    #allocation9 [shape = 'u8[8192]{0}', space=vmem, size = 0x2000, scoped, tag = 'output window, operand 3']
    #allocation10 [shape = 's32[2]{0}', space=sflag, size = 0x8, scoped, tag = 'scoped memory for tpu_custom_call.1']
    #allocation11 [shape = 'u8[8192]{0}', space=vmem, size = 0x2000, scoped, tag = 'output window, operand 4']
    #allocation12 [shape = 'u8[8192]{0}', space=vmem, size = 0x2000, scoped, tag = 'output window, operand 5']
    #allocation13 [shape = 's32[2]{0}', space=sflag, size = 0x8, scoped, tag = 'scoped memory for tpu_custom_call.1']
    %17 = vsyncpa [#allocation3], 0
    %18 = vsyncpa [#allocation4], 0
    %s19 = scalar_lea.sflag [#allocation4], 1
    %20 = vsyncpa %s19, 0
    %21 = vsyncpa [#allocation7], 0
    %s22 = scalar_lea.sflag [#allocation7], 1
    %23 = vsyncpa %s22, 0
    %24 = vsyncpa [#allocation10], 0
    %s25 = scalar_lea.sflag [#allocation10], 1
    %26 = vsyncpa %s25, 0
    %27 = vsyncpa [#allocation13], 0
    %s28 = scalar_lea.sflag [#allocation13], 1
    %29 = vsyncpa %s28, 0
    loop: start=0, step=1, limit=4
    $region2: #{tpu_custom_call.1} parent=1 // loop_pre_header
      _
    $region3: #{tpu_custom_call.1} parent=1 // loop_header
      %s31 = sphi 0, %s35
      %p32 = scmp.ge.s32.totalorder %s31, 4
      %s41 = sphi 0, %s43
      %s44 = sphi 0, %s41
      %s45 = sphi 0, %s44
      %s61 = sphi 0, %s45
      %s65 = sphi 0, %s65
      %s67 = sphi 0, %s65
      %s68 = sphi 0, %s67
      %s82 = sphi 0, %s68
      %s86 = sphi 0, %s86
      %s88 = sphi 0, %s86
      %s89 = sphi 0, %s88
      %s103 = sphi 0, %s89
      %s107 = sphi 0, %s107
      %s109 = sphi 0, %s107
      %s110 = sphi 0, %s109
      %s124 = sphi 0, %s110
      %s128 = sphi 0, %s128
      %s130 = sphi 0, %s128
      %s131 = sphi 0, %s130
      %s145 = sphi 0, %s131
      %s149 = sphi 0, %s149
      %s151 = sphi 0, %s149
      %s152 = sphi 0, %s151
      %s166 = sphi 0, %s152
      %s172 = sphi 0, %s174
      %s175 = sphi 0, %s172
      %s176 = sphi 0, %s175
      %s192 = sphi 0, %s176
      %s198 = sphi 0, %s200
      %s201 = sphi 0, %s198
      %s202 = sphi 0, %s201
      %s218 = sphi 0, %s202
      %s224 = sphi 0, %s226
      %s227 = sphi 0, %s224
      %s228 = sphi 0, %s227
      %s244 = sphi 0, %s228
      %s250 = sphi 0, %s252
      %s253 = sphi 0, %s250
      %s254 = sphi 0, %s253
      %s270 = sphi 0, %s254
      %s276 = sphi 0, %s278
      %s279 = sphi 0, %s276
      %s280 = sphi 0, %s279
      %s296 = sphi 0, %s280
      %s302 = sphi 0, %s304
      %s305 = sphi 0, %s302
      %s306 = sphi 0, %s305
      %s322 = sphi 0, %s306
    $region4: #{tpu_custom_call.1} parent=1 // loop_header_branch
      %34 = sbr.rel (%p32) target = $region8
    $region5: #{tpu_custom_call.1} parent=1 // loop_body
      %s36 = ssub.s32 %s31, 1
      %s37 = ssub.s32 %s31, 2
      %s38 = sadd.s32 %s31, 1
      %s39 = ssub.s32 %s31, %s38
      %p40 = scmp.eq.s32.totalorder %s39, 0
      %s42 = sadd.s32 %s41, 1
      %s43 = scalar_select %p40, %s41, %s42
      %p46 = pneg %p40
      %p47 = scmp.eq.s32.totalorder %s31, 1
      %p48 = por %p46, %p47
      %p49 = scmp.ne.s32.totalorder %s41, %s44
      %p50 = scmp.eq.s32.totalorder %s31, 0
      %p51 = por %p49, %p50
      %p52 = scmp.ne.s32.totalorder %s41, %s44
      %p53 = scmp.eq.s32.totalorder %s36, 1
      %p54 = por %p52, %p53
      %p55 = scmp.ne.s32.totalorder %s44, %s45
      %p56 = scmp.eq.s32.totalorder %s36, 0
      %p57 = por %p55, %p56
      %p58 = scmp.ne.s32.totalorder %s44, %s45
      %p59 = scmp.eq.s32.totalorder %s37, 1
      %p60 = por %p58, %p59
      %p62 = scmp.ne.s32.totalorder %s45, %s61
      %p63 = scmp.eq.s32.totalorder %s37, 0
      %p64 = por %p62, %p63
      %s66 = sadd.s32 %s65, 1
      %p69 = scmp.eq.s32.totalorder %s31, 1
      %p70 = scmp.ne.s32.totalorder %s65, %s67
      %p71 = scmp.eq.s32.totalorder %s31, 0
      %p72 = por %p70, %p71
      %p73 = scmp.ne.s32.totalorder %s65, %s67
      %p74 = scmp.eq.s32.totalorder %s36, 1
      %p75 = por %p73, %p74
      %p76 = scmp.ne.s32.totalorder %s67, %s68
      %p77 = scmp.eq.s32.totalorder %s36, 0
      %p78 = por %p76, %p77
      %p79 = scmp.ne.s32.totalorder %s67, %s68
      %p80 = scmp.eq.s32.totalorder %s37, 1
      %p81 = por %p79, %p80
      %p83 = scmp.ne.s32.totalorder %s68, %s82
      %p84 = scmp.eq.s32.totalorder %s37, 0
      %p85 = por %p83, %p84
      %s87 = sadd.s32 %s86, 1
      %p90 = scmp.eq.s32.totalorder %s31, 1
      %p91 = scmp.ne.s32.totalorder %s86, %s88
      %p92 = scmp.eq.s32.totalorder %s31, 0
      %p93 = por %p91, %p92
      %p94 = scmp.ne.s32.totalorder %s86, %s88
      %p95 = scmp.eq.s32.totalorder %s36, 1
      %p96 = por %p94, %p95
      %p97 = scmp.ne.s32.totalorder %s88, %s89
      %p98 = scmp.eq.s32.totalorder %s36, 0
      %p99 = por %p97, %p98
      %p100 = scmp.ne.s32.totalorder %s88, %s89
      %p101 = scmp.eq.s32.totalorder %s37, 1
      %p102 = por %p100, %p101
      %p104 = scmp.ne.s32.totalorder %s89, %s103
      %p105 = scmp.eq.s32.totalorder %s37, 0
      %p106 = por %p104, %p105
      %s108 = sadd.s32 %s107, 1
      %p111 = scmp.eq.s32.totalorder %s31, 1
      %p112 = scmp.ne.s32.totalorder %s107, %s109
      %p113 = scmp.eq.s32.totalorder %s31, 0
      %p114 = por %p112, %p113
      %p115 = scmp.ne.s32.totalorder %s107, %s109
      %p116 = scmp.eq.s32.totalorder %s36, 1
      %p117 = por %p115, %p116
      %p118 = scmp.ne.s32.totalorder %s109, %s110
      %p119 = scmp.eq.s32.totalorder %s36, 0
      %p120 = por %p118, %p119
      %p121 = scmp.ne.s32.totalorder %s109, %s110
      %p122 = scmp.eq.s32.totalorder %s37, 1
      %p123 = por %p121, %p122
      %p125 = scmp.ne.s32.totalorder %s110, %s124
      %p126 = scmp.eq.s32.totalorder %s37, 0
      %p127 = por %p125, %p126
      %s129 = sadd.s32 %s128, 1
      %p132 = scmp.eq.s32.totalorder %s31, 1
      %p133 = scmp.ne.s32.totalorder %s128, %s130
      %p134 = scmp.eq.s32.totalorder %s31, 0
      %p135 = por %p133, %p134
      %p136 = scmp.ne.s32.totalorder %s128, %s130
      %p137 = scmp.eq.s32.totalorder %s36, 1
      %p138 = por %p136, %p137
      %p139 = scmp.ne.s32.totalorder %s130, %s131
      %p140 = scmp.eq.s32.totalorder %s36, 0
      %p141 = por %p139, %p140
      %p142 = scmp.ne.s32.totalorder %s130, %s131
      %p143 = scmp.eq.s32.totalorder %s37, 1
      %p144 = por %p142, %p143
      %p146 = scmp.ne.s32.totalorder %s131, %s145
      %p147 = scmp.eq.s32.totalorder %s37, 0
      %p148 = por %p146, %p147
      %s150 = sadd.s32 %s149, 1
      %p153 = scmp.eq.s32.totalorder %s31, 1
      %p154 = scmp.ne.s32.totalorder %s149, %s151
      %p155 = scmp.eq.s32.totalorder %s31, 0
      %p156 = por %p154, %p155
      %p157 = scmp.ne.s32.totalorder %s149, %s151
      %p158 = scmp.eq.s32.totalorder %s36, 1
      %p159 = por %p157, %p158
      %p160 = scmp.ne.s32.totalorder %s151, %s152
      %p161 = scmp.eq.s32.totalorder %s36, 0
      %p162 = por %p160, %p161
      %p163 = scmp.ne.s32.totalorder %s151, %s152
      %p164 = scmp.eq.s32.totalorder %s37, 1
      %p165 = por %p163, %p164
      %p167 = scmp.ne.s32.totalorder %s152, %s166
      %p168 = scmp.eq.s32.totalorder %s37, 0
      %p169 = por %p167, %p168
      %s170 = ssub.s32 %s31, %s38
      %p171 = scmp.eq.s32.totalorder %s170, 0
      %s173 = sadd.s32 %s172, 1
      %s174 = scalar_select %p171, %s172, %s173
      %p177 = pneg %p171
      %p178 = scmp.eq.s32.totalorder %s31, 1
      %p179 = por %p177, %p178
      %p180 = scmp.ne.s32.totalorder %s172, %s175
      %p181 = scmp.eq.s32.totalorder %s31, 0
      %p182 = por %p180, %p181
      %p183 = scmp.ne.s32.totalorder %s172, %s175
      %p184 = scmp.eq.s32.totalorder %s36, 1
      %p185 = por %p183, %p184
      %p186 = scmp.ne.s32.totalorder %s175, %s176
      %p187 = scmp.eq.s32.totalorder %s36, 0
      %p188 = por %p186, %p187
      %p189 = scmp.ne.s32.totalorder %s175, %s176
      %p190 = scmp.eq.s32.totalorder %s37, 1
      %p191 = por %p189, %p190
      %p193 = scmp.ne.s32.totalorder %s176, %s192
      %p194 = scmp.eq.s32.totalorder %s37, 0
      %p195 = por %p193, %p194
      %s196 = ssub.s32 %s31, %s38
      %p197 = scmp.eq.s32.totalorder %s196, 0
      %s199 = sadd.s32 %s198, 1
      %s200 = scalar_select %p197, %s198, %s199
      %p203 = pneg %p197
      %p204 = scmp.eq.s32.totalorder %s31, 1
      %p205 = por %p203, %p204
      %p206 = scmp.ne.s32.totalorder %s198, %s201
      %p207 = scmp.eq.s32.totalorder %s31, 0
      %p208 = por %p206, %p207
      %p209 = scmp.ne.s32.totalorder %s198, %s201
      %p210 = scmp.eq.s32.totalorder %s36, 1
      %p211 = por %p209, %p210
      %p212 = scmp.ne.s32.totalorder %s201, %s202
      %p213 = scmp.eq.s32.totalorder %s36, 0
      %p214 = por %p212, %p213
      %p215 = scmp.ne.s32.totalorder %s201, %s202
      %p216 = scmp.eq.s32.totalorder %s37, 1
      %p217 = por %p215, %p216
      %p219 = scmp.ne.s32.totalorder %s202, %s218
      %p220 = scmp.eq.s32.totalorder %s37, 0
      %p221 = por %p219, %p220
      %s222 = ssub.s32 %s31, %s38
      %p223 = scmp.eq.s32.totalorder %s222, 0
      %s225 = sadd.s32 %s224, 1
      %s226 = scalar_select %p223, %s224, %s225
      %p229 = pneg %p223
      %p230 = scmp.eq.s32.totalorder %s31, 1
      %p231 = por %p229, %p230
      %p232 = scmp.ne.s32.totalorder %s224, %s227
      %p233 = scmp.eq.s32.totalorder %s31, 0
      %p234 = por %p232, %p233
      %p235 = scmp.ne.s32.totalorder %s224, %s227
      %p236 = scmp.eq.s32.totalorder %s36, 1
      %p237 = por %p235, %p236
      %p238 = scmp.ne.s32.totalorder %s227, %s228
      %p239 = scmp.eq.s32.totalorder %s36, 0
      %p240 = por %p238, %p239
      %p241 = scmp.ne.s32.totalorder %s227, %s228
      %p242 = scmp.eq.s32.totalorder %s37, 1
      %p243 = por %p241, %p242
      %p245 = scmp.ne.s32.totalorder %s228, %s244
      %p246 = scmp.eq.s32.totalorder %s37, 0
      %p247 = por %p245, %p246
      %s248 = ssub.s32 %s31, %s38
      %p249 = scmp.eq.s32.totalorder %s248, 0
      %s251 = sadd.s32 %s250, 1
      %s252 = scalar_select %p249, %s250, %s251
      %p255 = pneg %p249
      %p256 = scmp.eq.s32.totalorder %s31, 1
      %p257 = por %p255, %p256
      %p258 = scmp.ne.s32.totalorder %s250, %s253
      %p259 = scmp.eq.s32.totalorder %s31, 0
      %p260 = por %p258, %p259
      %p261 = scmp.ne.s32.totalorder %s250, %s253
      %p262 = scmp.eq.s32.totalorder %s36, 1
      %p263 = por %p261, %p262
      %p264 = scmp.ne.s32.totalorder %s253, %s254
      %p265 = scmp.eq.s32.totalorder %s36, 0
      %p266 = por %p264, %p265
      %p267 = scmp.ne.s32.totalorder %s253, %s254
      %p268 = scmp.eq.s32.totalorder %s37, 1
      %p269 = por %p267, %p268
      %p271 = scmp.ne.s32.totalorder %s254, %s270
      %p272 = scmp.eq.s32.totalorder %s37, 0
      %p273 = por %p271, %p272
      %s274 = ssub.s32 %s31, %s38
      %p275 = scmp.eq.s32.totalorder %s274, 0
      %s277 = sadd.s32 %s276, 1
      %s278 = scalar_select %p275, %s276, %s277
      %p281 = pneg %p275
      %p282 = scmp.eq.s32.totalorder %s31, 1
      %p283 = por %p281, %p282
      %p284 = scmp.ne.s32.totalorder %s276, %s279
      %p285 = scmp.eq.s32.totalorder %s31, 0
      %p286 = por %p284, %p285
      %p287 = scmp.ne.s32.totalorder %s276, %s279
      %p288 = scmp.eq.s32.totalorder %s36, 1
      %p289 = por %p287, %p288
      %p290 = scmp.ne.s32.totalorder %s279, %s280
      %p291 = scmp.eq.s32.totalorder %s36, 0
      %p292 = por %p290, %p291
      %p293 = scmp.ne.s32.totalorder %s279, %s280
      %p294 = scmp.eq.s32.totalorder %s37, 1
      %p295 = por %p293, %p294
      %p297 = scmp.ne.s32.totalorder %s280, %s296
      %p298 = scmp.eq.s32.totalorder %s37, 0
      %p299 = por %p297, %p298
      %s300 = ssub.s32 %s31, %s38
      %p301 = scmp.eq.s32.totalorder %s300, 0
      %s303 = sadd.s32 %s302, 1
      %s304 = scalar_select %p301, %s302, %s303
      %p307 = pneg %p301
      %p308 = scmp.eq.s32.totalorder %s31, 1
      %p309 = por %p307, %p308
      %p310 = scmp.ne.s32.totalorder %s302, %s305
      %p311 = scmp.eq.s32.totalorder %s31, 0
      %p312 = por %p310, %p311
      %p313 = scmp.ne.s32.totalorder %s302, %s305
      %p314 = scmp.eq.s32.totalorder %s36, 1
      %p315 = por %p313, %p314
      %p316 = scmp.ne.s32.totalorder %s305, %s306
      %p317 = scmp.eq.s32.totalorder %s36, 0
      %p318 = por %p316, %p317
      %p319 = scmp.ne.s32.totalorder %s305, %s306
      %p320 = scmp.eq.s32.totalorder %s37, 1
      %p321 = por %p319, %p320
      %p323 = scmp.ne.s32.totalorder %s306, %s322
      %p324 = scmp.eq.s32.totalorder %s37, 0
      %p325 = por %p323, %p324
      %p326 = scmp.le.s32.totalorder 1, %s31
      %p327 = scmp.lt.s32.totalorder %s31, 3
      %p328 = pnand %p326, %p327
      %p329 = pneg %p328
      // Predicated region
      $region9: #{tpu_custom_call.1} parent=5 // pred_check
        _
      $region10: #{tpu_custom_call.1} parent=5 // pred_check_branch
        %331 = sbr.rel (%p328) target = $region12
      $region11: #{tpu_custom_call.1} parent=5 // pred_region
        %s332 = ssub.s32 %s31, 1
        // Predicated region
        $region13: #{tpu_custom_call.1} parent=11 // pred_check
          %p333 = pneg %p78
        $region14: #{tpu_custom_call.1} parent=11 // pred_check_branch
          %335 = sbr.rel (%p333) target = $region16
        $region15: #{tpu_custom_call.1} parent=11 // pred_region
          %s337 = ssub.s32 3072, 3072
          %338 = vsyncadd [#allocation3], %s337
          %s339 = sshll.u32 [#allocation2], 4
          %s340 = int_to_ptr.vmem [resolvable:$true] %s339
          %345 = dma.hbm_to_vmem [thread:$0]  %s1, 3072, %s340, [#allocation3], 768, 768, 48
        $region16: #{tpu_custom_call.1} parent=11 // pred_fallthru
          _
        // Predicated region
        $region17: #{tpu_custom_call.1} parent=11 // pred_check
          %p346 = pneg %p99
        $region18: #{tpu_custom_call.1} parent=11 // pred_check_branch
          %348 = sbr.rel (%p346) target = $region20
        $region19: #{tpu_custom_call.1} parent=11 // pred_region
          _
        $region20: #{tpu_custom_call.1} parent=11 // pred_fallthru
          _
        // Predicated region
        $region21: #{tpu_custom_call.1} parent=11 // pred_check
          %p349 = pneg %p120
        $region22: #{tpu_custom_call.1} parent=11 // pred_check_branch
          %351 = sbr.rel (%p349) target = $region24
        $region23: #{tpu_custom_call.1} parent=11 // pred_region
          _
        $region24: #{tpu_custom_call.1} parent=11 // pred_fallthru
          _
        // Predicated region
        $region25: #{tpu_custom_call.1} parent=11 // pred_check
          %p352 = pneg %p141
        $region26: #{tpu_custom_call.1} parent=11 // pred_check_branch
          %354 = sbr.rel (%p352) target = $region28
        $region27: #{tpu_custom_call.1} parent=11 // pred_region
          _
        $region28: #{tpu_custom_call.1} parent=11 // pred_fallthru
          _
        // Predicated region
        $region29: #{tpu_custom_call.1} parent=11 // pred_check
          %p355 = pneg %p162
        $region30: #{tpu_custom_call.1} parent=11 // pred_check_branch
          %357 = sbr.rel (%p355) target = $region32
        $region31: #{tpu_custom_call.1} parent=11 // pred_region
          _
        $region32: #{tpu_custom_call.1} parent=11 // pred_fallthru
          _
      $region12: #{tpu_custom_call.1} parent=5 // pred_fallthru
        _
      %p358 = scmp.lt.s32.totalorder %s31, 2
      // Predicated region
      $region33: #{tpu_custom_call.1} parent=5 // pred_check
        %p359 = pneg %p358
      $region34: #{tpu_custom_call.1} parent=5 // pred_check_branch
        %361 = sbr.rel (%p359) target = $region36
      $region35: #{tpu_custom_call.1} parent=5 // pred_region
        // Predicated region
        $region37: #{tpu_custom_call.1} parent=35 // pred_check
          %p362 = pneg %p51
        $region38: #{tpu_custom_call.1} parent=35 // pred_check_branch
          %364 = sbr.rel (%p362) target = $region40
        $region39: #{tpu_custom_call.1} parent=35 // pred_region
          %p365 = scmp.lt.s32.totalorder %s31, 1
          %s366 = scalar_select %p365, %s31, 1
          %s367 = smul.addr %s366, 8
          %s368 = scalar_lea.vmem %s0, %s367
        $region40: #{tpu_custom_call.1} parent=35 // pred_fallthru
          _
      $region36: #{tpu_custom_call.1} parent=5 // pred_fallthru
        _
      %p369 = scmp.le.s32.totalorder 1, %s31
      %p370 = scmp.lt.s32.totalorder %s31, 3
      %p371 = pnand %p369, %p370
      %p372 = pneg %p371
      // Predicated region
      $region41: #{tpu_custom_call.1} parent=5 // pred_check
        _
      $region42: #{tpu_custom_call.1} parent=5 // pred_check_branch
        %374 = sbr.rel (%p371) target = $region44
      $region43: #{tpu_custom_call.1} parent=5 // pred_region
        %s375 = ssub.s32 %s31, 1
        // Predicated region
        $region45: #{tpu_custom_call.1} parent=43 // pred_check
          %p376 = pneg %p78
        $region46: #{tpu_custom_call.1} parent=43 // pred_check_branch
          %378 = sbr.rel (%p376) target = $region48
        $region47: #{tpu_custom_call.1} parent=43 // pred_region
          %379 = dma.done [#allocation3], 3072
        $region48: #{tpu_custom_call.1} parent=43 // pred_fallthru
          _
        %p380 = scmp.lt.s32.totalorder %s36, 1
        %s381 = scalar_select %p380, %s36, 1
        %s382 = smul.addr %s381, 8
        %s383 = scalar_lea.vmem %s0, %s382
        %p384 = pneg %p57
        %p385 = pneg %p54
        %p386 = pneg %p78
        %p387 = pneg %p75
        %p388 = pneg %p99
        %p389 = pneg %p96
        %p390 = pneg %p120
        %p391 = pneg %p117
        %p392 = pneg %p141
        %p393 = pneg %p138
        %p394 = pneg %p162
        %p395 = pneg %p159
        %p396 = pneg %p188
        %p397 = pneg %p185
        %s398 = sand.u32 %s175, 1
        %s399 = scalar_lea.sflag [#allocation4], %s398
        %s400 = sand.u32 %s175, 1
        %s401 = smul.addr %s400, 8
        %s402 = scalar_lea.vmem [#allocation5], %s401
        %p403 = pneg %p214
        %p404 = pneg %p211
        %s405 = sand.u32 %s36, 1
        %s406 = scalar_lea.sflag [#allocation7], %s405
        %s407 = sand.u32 %s201, 1
        %s408 = smul.addr %s407, 8
        %s409 = scalar_lea.vmem [#allocation6], %s408
        %p410 = pneg %p240
        %p411 = pneg %p237
        %s412 = sand.u32 %s36, 1
        %s413 = scalar_lea.sflag [#allocation7], %s412
        %s414 = sand.u32 %s227, 1
        %s415 = smul.addr %s414, 8
        %s416 = scalar_lea.vmem [#allocation8], %s415
        %p417 = pneg %p266
        %p418 = pneg %p263
        %s419 = sand.u32 %s36, 1
        %s420 = scalar_lea.sflag [#allocation10], %s419
        %s421 = sand.u32 %s253, 1
        %s422 = smul.addr %s421, 8
        %s423 = scalar_lea.vmem [#allocation9], %s422
        %p424 = pneg %p292
        %p425 = pneg %p289
        %s426 = sand.u32 %s36, 1
        %s427 = scalar_lea.sflag [#allocation10], %s426
        %s428 = sand.u32 %s279, 1
        %s429 = smul.addr %s428, 8
        %s430 = scalar_lea.vmem [#allocation11], %s429
        %p431 = pneg %p318
        %p432 = pneg %p315
        %s433 = sand.u32 %s305, 1
        %s434 = scalar_lea.sflag [#allocation13], %s433
        %s435 = sand.u32 %s305, 1
        %s436 = smul.addr %s435, 8
        %s437 = scalar_lea.vmem [#allocation12], %s436
        %p438 = scmp.lt.s32.totalorder %s36, 1
        %s439 = scalar_select %p438, %s36, 1
        %s440 = smul.addr %s439, 8
        %s441 = scalar_lea.vmem %s0, %s440
        %v442 = vld [vmem:[%s441] sm:$0xff]
        %v443 = vld [vmem:[#allocation2] sm:$0xff]
        %v444 = vld [vmem:[#allocation2 + $0x8] sm:$0xff]
        %v445 = vld [vmem:[#allocation2 + $0x10] sm:$0xff]
        %v446 = vld [vmem:[#allocation2 + $0x18] sm:$0xff]
        %v447 = vld [vmem:[#allocation2 + $0x20] sm:$0xff]
        %v448 = vld [vmem:[#allocation2 + $0x28] sm:$0xff]
        %v449 = vld [vmem:[#allocation2 + $0x30] sm:$0xff]
        %v450 = vld [vmem:[#allocation2 + $0x38] sm:$0xff]
        %v451 = vld [vmem:[#allocation2 + $0x40] sm:$0xff]
        %v452 = vld [vmem:[#allocation2 + $0x48] sm:$0xff]
        %v453 = vld [vmem:[#allocation2 + $0x50] sm:$0xff]
        %v454 = vld [vmem:[#allocation2 + $0x58] sm:$0xff]
        %v455 = vld [vmem:[#allocation2 + $0x60] sm:$0xff]
        %v456 = vld [vmem:[#allocation2 + $0x68] sm:$0xff]
        %v457 = vld [vmem:[#allocation2 + $0x70] sm:$0xff]
        %v458 = vld [vmem:[#allocation2 + $0x78] sm:$0xff]
        %v459 = vld [vmem:[#allocation2 + $0x80] sm:$0xff]
        %v460 = vld [vmem:[#allocation2 + $0x88] sm:$0xff]
        %v461 = vld [vmem:[#allocation2 + $0x90] sm:$0xff]
        %v462 = vld [vmem:[#allocation2 + $0x98] sm:$0xff]
        %v463 = vld [vmem:[#allocation2 + $0xa0] sm:$0xff]
        %v464 = vld [vmem:[#allocation2 + $0xa8] sm:$0xff]
        %v465 = vld [vmem:[#allocation2 + $0xb0] sm:$0xff]
        %v466 = vld [vmem:[#allocation2 + $0xb8] sm:$0xff]
        %v467 = vld [vmem:[%s2] sm:$0x3f]
        %v469 = vlaneseq
        %v470 = vshrl.u32 %v469, 7
        %v471 = vsub.s32 0, %v470
        %v472 = vrot.slane %v467, %v471
        %v473 = vlaneseq
        %v474 = vshrl.u32 %v473, 7
        %v475 = vsub.s32 1, %v474
        %v476 = vrot.slane %v467, %v475
        %v477 = vlaneseq
        %v478 = vshrl.u32 %v477, 7
        %v479 = vsub.s32 2, %v478
        %v480 = vrot.slane %v467, %v479
        %v481 = vlaneseq
        %v482 = vshrl.u32 %v481, 7
        %v483 = vsub.s32 3, %v482
        %v484 = vrot.slane %v467, %v483
        %v485 = vlaneseq
        %v486 = vshrl.u32 %v485, 7
        %v487 = vsub.s32 4, %v486
        %v488 = vrot.slane %v467, %v487
        %v489 = vlaneseq
        %v490 = vshrl.u32 %v489, 7
        %v491 = vsub.s32 5, %v490
        %v492 = vrot.slane %v467, %v491
        %vm499 = vcmask 261120
        %v501 = vsel %vm499, %v442, 0
        %503 = vmatprep.subr.mxu0 %v444
        %504 = vmatpush1.msra.mxu0 %v443
        %505 = vmatprep.subr.mxu0 %v450
        %506 = vmatpush1.msra.mxu0 %v449
        %507 = vmatprep.subr.mxu0 %v456
        %508 = vmatpush1.msra.mxu0 %v455
        %509 = vmatprep.subr.mxu0 %v462
        %510 = vmatpush1.msra.mxu0 %v461
        %511 = vmatprep.subr.mxu0 0.0
        %512 = vmatpush1.msra.mxu0 0.0
        %513 = vmatprep.subr.mxu0 0.0
        %514 = vmatpush1.msra.mxu0 0.0
        %515 = vmatprep.subr.mxu0 0.0
        %516 = vmatpush1.msra.mxu0 0.0
        %517 = vmatprep.subr.mxu0 0.0
        %518 = vmatpush1.msra.mxu0 0.0
        %519 = vmatprep.subr.mxu0 0.0
        %520 = vmatpush1.msra.mxu0 0.0
        %521 = vmatprep.subr.mxu0 0.0
        %522 = vmatpush1.msra.mxu0 0.0
        %523 = vmatprep.subr.mxu0 0.0
        %524 = vmatpush1.msra.mxu0 0.0
        %525 = vmatprep.subr.mxu0 0.0
        %526 = vmatpush1.msra.mxu0 0.0
        %527 = vmatprep.subr.mxu0 0.0
        %528 = vmatpush1.msra.mxu0 0.0
        %529 = vmatprep.subr.mxu0 0.0
        %530 = vmatpush1.msra.mxu0 0.0
        %531 = vmatprep.subr.mxu0 0.0
        %532 = vmatpush1.msra.mxu0 0.0
        %533 = vmatprep.subr.mxu0 0.0
        %534 = vmatpush1.msra.mxu0 0.0
        %535 = vmatprep.subr.mxu0 0.0
        %536 = vmatpush1.msra.mxu0 0.0
        %537 = vmatprep.subr.mxu0 0.0
        %538 = vmatpush1.msra.mxu0 0.0
        %539 = vmatprep.subr.mxu0 0.0
        %540 = vmatpush1.msra.mxu0 0.0
        %541 = vmatprep.subr.mxu0 0.0
        %542 = vmatpush1.msra.mxu0 0.0
        %543 = vmatprep.subr.mxu0 0.0
        %544 = vmatpush1.msra.mxu0 0.0
        %545 = vmatprep.subr.mxu0 0.0
        %546 = vmatpush1.msra.mxu0 0.0
        %547 = vmatprep.subr.mxu0 0.0
        %548 = vmatpush1.msra.mxu0 0.0
        %549 = vmatprep.subr.mxu0 0.0
        %550 = vmatpush1.msra.mxu0 0.0
        %551 = vmatprep.subr.mxu0 0.0
        %552 = vmatpush1.msra.mxu0 0.0
        %553 = vmatprep.subr.mxu0 0.0
        %554 = vmatpush1.msra.mxu0 0.0
        %555 = vmatprep.subr.mxu0 0.0
        %556 = vmatpush1.msra.mxu0 0.0
        %557 = vmatprep.subr.mxu0 0.0
        %558 = vmatpush1.msra.mxu0 0.0
        %559 = vmatprep.subr.mxu0 0.0
        %560 = vmatpush1.msra.mxu0 0.0
        %561 = vmatprep.subr.mxu0 0.0
        %562 = vmatpush1.msra.mxu0 0.0
        %563 = vmatprep.subr.mxu0 0.0
        %564 = vmatpush1.msra.mxu0 0.0
        %565 = vmatprep.subr.mxu0 0.0
        %566 = vmatpush1.msra.mxu0 0.0
        %567 = vmatprep.mubr.f32.mxu0 0.0
        %568 = vmatmul.mubr.f32.gmra.mrb[0].mxu0 %v501
        %v569 = vpop.f32.mrb[0].mxu0
        %v570 = vadd.f32 %v472, %v569
        %v571 = vpop.f32.mrb[0].mxu0
        %v572 = vadd.f32 %v476, %v571
        %573 = vdwg.mxu0
        %574 = vmatprep.subr.mxu0 %v446
        %575 = vmatpush1.msra.mxu0 %v445
        %576 = vmatprep.subr.mxu0 %v452
        %577 = vmatpush1.msra.mxu0 %v451
        %578 = vmatprep.subr.mxu0 %v458
        %579 = vmatpush1.msra.mxu0 %v457
        %580 = vmatprep.subr.mxu0 %v464
        %581 = vmatpush1.msra.mxu0 %v463
        %582 = vmatprep.subr.mxu0 0.0
        %583 = vmatpush1.msra.mxu0 0.0
        %584 = vmatprep.subr.mxu0 0.0
        %585 = vmatpush1.msra.mxu0 0.0
        %586 = vmatprep.subr.mxu0 0.0
        %587 = vmatpush1.msra.mxu0 0.0
        %588 = vmatprep.subr.mxu0 0.0
        %589 = vmatpush1.msra.mxu0 0.0
        %590 = vmatprep.subr.mxu0 0.0
        %591 = vmatpush1.msra.mxu0 0.0
        %592 = vmatprep.subr.mxu0 0.0
        %593 = vmatpush1.msra.mxu0 0.0
        %594 = vmatprep.subr.mxu0 0.0
        %595 = vmatpush1.msra.mxu0 0.0
        %596 = vmatprep.subr.mxu0 0.0
        %597 = vmatpush1.msra.mxu0 0.0
        %598 = vmatprep.subr.mxu0 0.0
        %599 = vmatpush1.msra.mxu0 0.0
        %600 = vmatprep.subr.mxu0 0.0
        %601 = vmatpush1.msra.mxu0 0.0
        %602 = vmatprep.subr.mxu0 0.0
        %603 = vmatpush1.msra.mxu0 0.0
        %604 = vmatprep.subr.mxu0 0.0
        %605 = vmatpush1.msra.mxu0 0.0
        %606 = vmatprep.subr.mxu0 0.0
        %607 = vmatpush1.msra.mxu0 0.0
        %608 = vmatprep.subr.mxu0 0.0
        %609 = vmatpush1.msra.mxu0 0.0
        %610 = vmatprep.subr.mxu0 0.0
        %611 = vmatpush1.msra.mxu0 0.0
        %612 = vmatprep.subr.mxu0 0.0
        %613 = vmatpush1.msra.mxu0 0.0
        %614 = vmatprep.subr.mxu0 0.0
        %615 = vmatpush1.msra.mxu0 0.0
        %616 = vmatprep.subr.mxu0 0.0
        %617 = vmatpush1.msra.mxu0 0.0
        %618 = vmatprep.subr.mxu0 0.0
        %619 = vmatpush1.msra.mxu0 0.0
        %620 = vmatprep.subr.mxu0 0.0
        %621 = vmatpush1.msra.mxu0 0.0
        %622 = vmatprep.subr.mxu0 0.0
        %623 = vmatpush1.msra.mxu0 0.0
        %624 = vmatprep.subr.mxu0 0.0
        %625 = vmatpush1.msra.mxu0 0.0
        %626 = vmatprep.subr.mxu0 0.0
        %627 = vmatpush1.msra.mxu0 0.0
        %628 = vmatprep.subr.mxu0 0.0
        %629 = vmatpush1.msra.mxu0 0.0
        %630 = vmatprep.subr.mxu0 0.0
        %631 = vmatpush1.msra.mxu0 0.0
        %632 = vmatprep.subr.mxu0 0.0
        %633 = vmatpush1.msra.mxu0 0.0
        %634 = vmatprep.subr.mxu0 0.0
        %635 = vmatpush1.msra.mxu0 0.0
        %636 = vmatprep.subr.mxu0 0.0
        %637 = vmatpush1.msra.mxu0 0.0
        %638 = vmatprep.mubr.f32.mxu0 0.0
        %639 = vmatmul.mubr.f32.gmra.mrb[0].mxu0 %v501
        %v640 = vpop.f32.mrb[0].mxu0
        %v641 = vadd.f32 %v480, %v640
        %v642 = vpop.f32.mrb[0].mxu0
        %v643 = vadd.f32 %v484, %v642
        %644 = vdwg.mxu0
        %645 = vmatprep.subr.mxu0 %v448
        %646 = vmatpush1.msra.mxu0 %v447
        %647 = vmatprep.subr.mxu0 %v454
        %648 = vmatpush1.msra.mxu0 %v453
        %649 = vmatprep.subr.mxu0 %v460
        %650 = vmatpush1.msra.mxu0 %v459
        %651 = vmatprep.subr.mxu0 %v466
        %652 = vmatpush1.msra.mxu0 %v465
        %653 = vmatprep.subr.mxu0 0.0
        %654 = vmatpush1.msra.mxu0 0.0
        %655 = vmatprep.subr.mxu0 0.0
        %656 = vmatpush1.msra.mxu0 0.0
        %657 = vmatprep.subr.mxu0 0.0
        %658 = vmatpush1.msra.mxu0 0.0
        %659 = vmatprep.subr.mxu0 0.0
        %660 = vmatpush1.msra.mxu0 0.0
        %661 = vmatprep.subr.mxu0 0.0
        %662 = vmatpush1.msra.mxu0 0.0
        %663 = vmatprep.subr.mxu0 0.0
        %664 = vmatpush1.msra.mxu0 0.0
        %665 = vmatprep.subr.mxu0 0.0
        %666 = vmatpush1.msra.mxu0 0.0
        %667 = vmatprep.subr.mxu0 0.0
        %668 = vmatpush1.msra.mxu0 0.0
        %669 = vmatprep.subr.mxu0 0.0
        %670 = vmatpush1.msra.mxu0 0.0
        %671 = vmatprep.subr.mxu0 0.0
        %672 = vmatpush1.msra.mxu0 0.0
        %673 = vmatprep.subr.mxu0 0.0
        %674 = vmatpush1.msra.mxu0 0.0
        %675 = vmatprep.subr.mxu0 0.0
        %676 = vmatpush1.msra.mxu0 0.0
        %677 = vmatprep.subr.mxu0 0.0
        %678 = vmatpush1.msra.mxu0 0.0
        %679 = vmatprep.subr.mxu0 0.0
        %680 = vmatpush1.msra.mxu0 0.0
        %681 = vmatprep.subr.mxu0 0.0
        %682 = vmatpush1.msra.mxu0 0.0
        %683 = vmatprep.subr.mxu0 0.0
        %684 = vmatpush1.msra.mxu0 0.0
        %685 = vmatprep.subr.mxu0 0.0
        %686 = vmatpush1.msra.mxu0 0.0
        %687 = vmatprep.subr.mxu0 0.0
        %688 = vmatpush1.msra.mxu0 0.0
        %689 = vmatprep.subr.mxu0 0.0
        %690 = vmatpush1.msra.mxu0 0.0
        %691 = vmatprep.subr.mxu0 0.0
        %692 = vmatpush1.msra.mxu0 0.0
        %693 = vmatprep.subr.mxu0 0.0
        %694 = vmatpush1.msra.mxu0 0.0
        %695 = vmatprep.subr.mxu0 0.0
        %696 = vmatpush1.msra.mxu0 0.0
        %697 = vmatprep.subr.mxu0 0.0
        %698 = vmatpush1.msra.mxu0 0.0
        %699 = vmatprep.subr.mxu0 0.0
        %700 = vmatpush1.msra.mxu0 0.0
        %701 = vmatprep.subr.mxu0 0.0
        %702 = vmatpush1.msra.mxu0 0.0
        %703 = vmatprep.subr.mxu0 0.0
        %704 = vmatpush1.msra.mxu0 0.0
        %705 = vmatprep.subr.mxu0 0.0
        %706 = vmatpush1.msra.mxu0 0.0
        %707 = vmatprep.subr.mxu0 0.0
        %708 = vmatpush1.msra.mxu0 0.0
        %709 = vmatprep.mubr.f32.mxu0 0.0
        %710 = vmatmul.mubr.f32.gmra.mrb[0].mxu0 %v501
        %v711 = vpop.f32.mrb[0].mxu0
        %v712 = vadd.f32 %v488, %v711
        %v713 = vpop.f32.mrb[0].mxu0
        %v714 = vadd.f32 %v492, %v713
        %715 = vdwg.mxu0
        %716 = vmax.xlane.f32.xlu0 %v714
        %v717 = vpop.xlane.xlu0 %716
        %v718 = vsub.f32 %v714, %v717
        %v719 = vmul.f32 %v718, 1.442695
        %v720 = vpow.pop %v719
        %721 = vadd.xlane.f32.xlu0 %v720
        %v722 = vpop.xlane.xlu0 %721
        %v723 = vrcp.pop %v722
        %v724 = vmul.f32 %v720, %v723
        %v725 = vld [vmem:[%s3] sm:$0xff]
        %v726 = vld [vmem:[%s3 + $0x8] sm:$0xff]
        %v727 = vld [vmem:[%s3 + $0x10] sm:$0xff]
        %v728 = vld [vmem:[%s3 + $0x18] sm:$0xff]
        %v729 = vld [vmem:[%s3 + $0x20] sm:$0xff]
        %v730 = vld [vmem:[%s3 + $0x28] sm:$0xff]
        %v731 = vld [vmem:[%s3 + $0x30] sm:$0xff]
        %v732 = vld [vmem:[%s3 + $0x38] sm:$0xff]
        %v733 = vld [vmem:[%s3 + $0x40] sm:$0xff]
        %v734 = vld [vmem:[%s3 + $0x48] sm:$0xff]
        %v735 = vld [vmem:[%s3 + $0x50] sm:$0xff]
        %v736 = vld [vmem:[%s3 + $0x58] sm:$0xff]
        %v737 = vld [vmem:[%s3 + $0x60] sm:$0xff]
        %v738 = vld [vmem:[%s3 + $0x68] sm:$0xff]
        %v739 = vld [vmem:[%s3 + $0x70] sm:$0xff]
        %v740 = vld [vmem:[%s3 + $0x78] sm:$0xff]
        %v741 = vld [vmem:[%s3 + $0x80] sm:$0xff]
        %v742 = vld [vmem:[%s3 + $0x88] sm:$0xff]
        %v743 = vld [vmem:[%s3 + $0x90] sm:$0xff]
        %v744 = vld [vmem:[%s3 + $0x98] sm:$0xff]
        %v745 = vld [vmem:[%s3 + $0xa0] sm:$0xff]
        %v746 = vld [vmem:[%s3 + $0xa8] sm:$0xff]
        %v747 = vld [vmem:[%s3 + $0xb0] sm:$0xff]
        %v748 = vld [vmem:[%s3 + $0xb8] sm:$0xff]
        %v749 = vld [vmem:[%s3 + $0xc0] sm:$0xff]
        %v750 = vld [vmem:[%s3 + $0xc8] sm:$0xff]
        %v751 = vld [vmem:[%s3 + $0xd0] sm:$0xff]
        %v752 = vld [vmem:[%s3 + $0xd8] sm:$0xff]
        %v753 = vld [vmem:[%s3 + $0xe0] sm:$0xff]
        %v754 = vld [vmem:[%s3 + $0xe8] sm:$0xff]
        %v755 = vld [vmem:[%s3 + $0xf0] sm:$0xff]
        %v756 = vld [vmem:[%s3 + $0xf8] sm:$0xff]
        %v757 = vld [vmem:[%s3 + $0x100] sm:$0xff]
        %v758 = vld [vmem:[%s3 + $0x108] sm:$0xff]
        %v759 = vld [vmem:[%s3 + $0x110] sm:$0xff]
        %v760 = vld [vmem:[%s3 + $0x118] sm:$0xff]
        %v761 = vld [vmem:[%s3 + $0x120] sm:$0xff]
        %v762 = vld [vmem:[%s3 + $0x128] sm:$0xff]
        %v763 = vld [vmem:[%s3 + $0x130] sm:$0xff]
        %v764 = vld [vmem:[%s3 + $0x138] sm:$0xff]
        %v765 = vld [vmem:[%s3 + $0x140] sm:$0xff]
        %v766 = vld [vmem:[%s3 + $0x148] sm:$0xff]
        %v767 = vld [vmem:[%s3 + $0x150] sm:$0xff]
        %v768 = vld [vmem:[%s3 + $0x158] sm:$0xff]
        %v769 = vld [vmem:[%s3 + $0x160] sm:$0xff]
        %v770 = vld [vmem:[%s3 + $0x168] sm:$0xff]
        %v771 = vld [vmem:[%s3 + $0x170] sm:$0xff]
        %v772 = vld [vmem:[%s3 + $0x178] sm:$0xff]
        %v773 = vld [vmem:[%s3 + $0x180] sm:$0xff]
        %v774 = vld [vmem:[%s3 + $0x188] sm:$0xff]
        %v775 = vld [vmem:[%s3 + $0x190] sm:$0xff]
        %v776 = vld [vmem:[%s3 + $0x198] sm:$0xff]
        %v777 = vld [vmem:[%s3 + $0x1a0] sm:$0xff]
        %v778 = vld [vmem:[%s3 + $0x1a8] sm:$0xff]
        %v779 = vld [vmem:[%s3 + $0x1b0] sm:$0xff]
        %v780 = vld [vmem:[%s3 + $0x1b8] sm:$0xff]
        %v781 = vld [vmem:[%s3 + $0x1c0] sm:$0xff]
        %v782 = vld [vmem:[%s3 + $0x1c8] sm:$0xff]
        %v783 = vld [vmem:[%s3 + $0x1d0] sm:$0xff]
        %v784 = vld [vmem:[%s3 + $0x1d8] sm:$0xff]
        %v785 = vld [vmem:[%s3 + $0x1e0] sm:$0xff]
        %v786 = vld [vmem:[%s3 + $0x1e8] sm:$0xff]
        %v787 = vld [vmem:[%s3 + $0x1f0] sm:$0xff]
        %v788 = vld [vmem:[%s3 + $0x1f8] sm:$0xff]
        %v789 = vld [vmem:[%s3 + $0x200] sm:$0xff]
        %v790 = vld [vmem:[%s3 + $0x208] sm:$0xff]
        %v791 = vld [vmem:[%s3 + $0x210] sm:$0xff]
        %v792 = vld [vmem:[%s3 + $0x218] sm:$0xff]
        %v793 = vld [vmem:[%s3 + $0x220] sm:$0xff]
        %v794 = vld [vmem:[%s3 + $0x228] sm:$0xff]
        %v795 = vld [vmem:[%s3 + $0x230] sm:$0xff]
        %v796 = vld [vmem:[%s3 + $0x238] sm:$0xff]
        %v797 = vld [vmem:[%s3 + $0x240] sm:$0xff]
        %v798 = vld [vmem:[%s3 + $0x248] sm:$0xff]
        %v799 = vld [vmem:[%s3 + $0x250] sm:$0xff]
        %v800 = vld [vmem:[%s3 + $0x258] sm:$0xff]
        %v801 = vld [vmem:[%s3 + $0x260] sm:$0xff]
        %v802 = vld [vmem:[%s3 + $0x268] sm:$0xff]
        %v803 = vld [vmem:[%s3 + $0x270] sm:$0xff]
        %v804 = vld [vmem:[%s3 + $0x278] sm:$0xff]
        %805 = vmatprep.subr.mxu0 %v726
        %806 = vmatpush1.msra.mxu0 %v725
        %807 = vmatprep.subr.mxu0 %v731
        %808 = vmatpush1.msra.mxu0 %v730
        %809 = vmatprep.subr.mxu0 %v736
        %810 = vmatpush1.msra.mxu0 %v735
        %811 = vmatprep.subr.mxu0 %v741
        %812 = vmatpush1.msra.mxu0 %v740
        %813 = vmatprep.subr.mxu0 %v746
        %814 = vmatpush1.msra.mxu0 %v745
        %815 = vmatprep.subr.mxu0 %v751
        %816 = vmatpush1.msra.mxu0 %v750
        %817 = vmatprep.subr.mxu0 %v756
        %818 = vmatpush1.msra.mxu0 %v755
        %819 = vmatprep.subr.mxu0 %v761
        %820 = vmatpush1.msra.mxu0 %v760
        %821 = vmatprep.subr.mxu0 %v766
        %822 = vmatpush1.msra.mxu0 %v765
        %823 = vmatprep.subr.mxu0 %v771
        %824 = vmatpush1.msra.mxu0 %v770
        %825 = vmatprep.subr.mxu0 %v776
        %826 = vmatpush1.msra.mxu0 %v775
        %827 = vmatprep.subr.mxu0 %v781
        %828 = vmatpush1.msra.mxu0 %v780
        %829 = vmatprep.subr.mxu0 %v786
        %830 = vmatpush1.msra.mxu0 %v785
        %831 = vmatprep.subr.mxu0 %v791
        %832 = vmatpush1.msra.mxu0 %v790
        %833 = vmatprep.subr.mxu0 %v796
        %834 = vmatpush1.msra.mxu0 %v795
        %835 = vmatprep.subr.mxu0 %v801
        %836 = vmatpush1.msra.mxu0 %v800
        %837 = vmatprep.subr.mxu0 0.0
        %838 = vmatpush1.msra.mxu0 0.0
        %839 = vmatprep.subr.mxu0 0.0
        %840 = vmatpush1.msra.mxu0 0.0
        %841 = vmatprep.subr.mxu0 0.0
        %842 = vmatpush1.msra.mxu0 0.0
        %843 = vmatprep.subr.mxu0 0.0
        %844 = vmatpush1.msra.mxu0 0.0
        %845 = vmatprep.subr.mxu0 0.0
        %846 = vmatpush1.msra.mxu0 0.0
        %847 = vmatprep.subr.mxu0 0.0
        %848 = vmatpush1.msra.mxu0 0.0
        %849 = vmatprep.subr.mxu0 0.0
        %850 = vmatpush1.msra.mxu0 0.0
        %851 = vmatprep.subr.mxu0 0.0
        %852 = vmatpush1.msra.mxu0 0.0
        %853 = vmatprep.subr.mxu0 0.0
        %854 = vmatpush1.msra.mxu0 0.0
        %855 = vmatprep.subr.mxu0 0.0
        %856 = vmatpush1.msra.mxu0 0.0
        %857 = vmatprep.subr.mxu0 0.0
        %858 = vmatpush1.msra.mxu0 0.0
        %859 = vmatprep.subr.mxu0 0.0
        %860 = vmatpush1.msra.mxu0 0.0
        %861 = vmatprep.subr.mxu0 0.0
        %862 = vmatpush1.msra.mxu0 0.0
        %863 = vmatprep.subr.mxu0 0.0
        %864 = vmatpush1.msra.mxu0 0.0
        %865 = vmatprep.subr.mxu0 0.0
        %866 = vmatpush1.msra.mxu0 0.0
        %867 = vmatprep.subr.mxu0 0.0
        %868 = vmatpush1.msra.mxu0 0.0
        %869 = vmatprep.mubr.f32.mxu0 0.0
        %870 = vmatmul.mubr.f32.gmra.mrb[0].mxu0 %v724
        %v871 = vpop.f32.mrb[0].mxu0
        %v872 = vadd.f32 0.0, %v871
        %v873 = vpop.f32.mrb[0].mxu0
        %v874 = vadd.f32 0.0, %v873
        %875 = vdwg.mxu0
        %876 = vmatprep.subr.mxu0 %v728
        %877 = vmatpush1.msra.mxu0 %v727
        %878 = vmatprep.subr.mxu0 %v733
        %879 = vmatpush1.msra.mxu0 %v732
        %880 = vmatprep.subr.mxu0 %v738
        %881 = vmatpush1.msra.mxu0 %v737
        %882 = vmatprep.subr.mxu0 %v743
        %883 = vmatpush1.msra.mxu0 %v742
        %884 = vmatprep.subr.mxu0 %v748
        %885 = vmatpush1.msra.mxu0 %v747
        %886 = vmatprep.subr.mxu0 %v753
        %887 = vmatpush1.msra.mxu0 %v752
        %888 = vmatprep.subr.mxu0 %v758
        %889 = vmatpush1.msra.mxu0 %v757
        %890 = vmatprep.subr.mxu0 %v763
        %891 = vmatpush1.msra.mxu0 %v762
        %892 = vmatprep.subr.mxu0 %v768
        %893 = vmatpush1.msra.mxu0 %v767
        %894 = vmatprep.subr.mxu0 %v773
        %895 = vmatpush1.msra.mxu0 %v772
        %896 = vmatprep.subr.mxu0 %v778
        %897 = vmatpush1.msra.mxu0 %v777
        %898 = vmatprep.subr.mxu0 %v783
        %899 = vmatpush1.msra.mxu0 %v782
        %900 = vmatprep.subr.mxu0 %v788
        %901 = vmatpush1.msra.mxu0 %v787
        %902 = vmatprep.subr.mxu0 %v793
        %903 = vmatpush1.msra.mxu0 %v792
        %904 = vmatprep.subr.mxu0 %v798
        %905 = vmatpush1.msra.mxu0 %v797
        %906 = vmatprep.subr.mxu0 %v803
        %907 = vmatpush1.msra.mxu0 %v802
        %908 = vmatprep.subr.mxu0 0.0
        %909 = vmatpush1.msra.mxu0 0.0
        %910 = vmatprep.subr.mxu0 0.0
        %911 = vmatpush1.msra.mxu0 0.0
        %912 = vmatprep.subr.mxu0 0.0
        %913 = vmatpush1.msra.mxu0 0.0
        %914 = vmatprep.subr.mxu0 0.0
        %915 = vmatpush1.msra.mxu0 0.0
        %916 = vmatprep.subr.mxu0 0.0
        %917 = vmatpush1.msra.mxu0 0.0
        %918 = vmatprep.subr.mxu0 0.0
        %919 = vmatpush1.msra.mxu0 0.0
        %920 = vmatprep.subr.mxu0 0.0
        %921 = vmatpush1.msra.mxu0 0.0
        %922 = vmatprep.subr.mxu0 0.0
        %923 = vmatpush1.msra.mxu0 0.0
        %924 = vmatprep.subr.mxu0 0.0
        %925 = vmatpush1.msra.mxu0 0.0
        %926 = vmatprep.subr.mxu0 0.0
        %927 = vmatpush1.msra.mxu0 0.0
        %928 = vmatprep.subr.mxu0 0.0
        %929 = vmatpush1.msra.mxu0 0.0
        %930 = vmatprep.subr.mxu0 0.0
        %931 = vmatpush1.msra.mxu0 0.0
        %932 = vmatprep.subr.mxu0 0.0
        %933 = vmatpush1.msra.mxu0 0.0
        %934 = vmatprep.subr.mxu0 0.0
        %935 = vmatpush1.msra.mxu0 0.0
        %936 = vmatprep.subr.mxu0 0.0
        %937 = vmatpush1.msra.mxu0 0.0
        %938 = vmatprep.subr.mxu0 0.0
        %939 = vmatpush1.msra.mxu0 0.0
        %940 = vmatprep.mubr.f32.mxu0 0.0
        %941 = vmatmul.mubr.f32.gmra.mrb[0].mxu0 %v724
        %v942 = vpop.f32.mrb[0].mxu0
        %v943 = vadd.f32 0.0, %v942
        %v944 = vpop.f32.mrb[0].mxu0
        %v945 = vadd.f32 0.0, %v944
        %946 = vdwg.mxu0
        %947 = vmatprep.subr.mxu0 0.0
        %948 = vmatpush1.msra.mxu0 %v729
        %949 = vmatprep.subr.mxu0 0.0
        %950 = vmatpush1.msra.mxu0 %v734
        %951 = vmatprep.subr.mxu0 0.0
        %952 = vmatpush1.msra.mxu0 %v739
        %953 = vmatprep.subr.mxu0 0.0
        %954 = vmatpush1.msra.mxu0 %v744
        %955 = vmatprep.subr.mxu0 0.0
        %956 = vmatpush1.msra.mxu0 %v749
        %957 = vmatprep.subr.mxu0 0.0
        %958 = vmatpush1.msra.mxu0 %v754
        %959 = vmatprep.subr.mxu0 0.0
        %960 = vmatpush1.msra.mxu0 %v759
        %961 = vmatprep.subr.mxu0 0.0
        %962 = vmatpush1.msra.mxu0 %v764
        %963 = vmatprep.subr.mxu0 0.0
        %964 = vmatpush1.msra.mxu0 %v769
        %965 = vmatprep.subr.mxu0 0.0
        %966 = vmatpush1.msra.mxu0 %v774
        %967 = vmatprep.subr.mxu0 0.0
        %968 = vmatpush1.msra.mxu0 %v779
        %969 = vmatprep.subr.mxu0 0.0
        %970 = vmatpush1.msra.mxu0 %v784
        %971 = vmatprep.subr.mxu0 0.0
        %972 = vmatpush1.msra.mxu0 %v789
        %973 = vmatprep.subr.mxu0 0.0
        %974 = vmatpush1.msra.mxu0 %v794
        %975 = vmatprep.subr.mxu0 0.0
        %976 = vmatpush1.msra.mxu0 %v799
        %977 = vmatprep.subr.mxu0 0.0
        %978 = vmatpush1.msra.mxu0 %v804
        %979 = vmatprep.subr.mxu0 0.0
        %980 = vmatpush1.msra.mxu0 0.0
        %981 = vmatprep.subr.mxu0 0.0
        %982 = vmatpush1.msra.mxu0 0.0
        %983 = vmatprep.subr.mxu0 0.0
        %984 = vmatpush1.msra.mxu0 0.0
        %985 = vmatprep.subr.mxu0 0.0
        %986 = vmatpush1.msra.mxu0 0.0
        %987 = vmatprep.subr.mxu0 0.0
        %988 = vmatpush1.msra.mxu0 0.0
        %989 = vmatprep.subr.mxu0 0.0
        %990 = vmatpush1.msra.mxu0 0.0
        %991 = vmatprep.subr.mxu0 0.0
        %992 = vmatpush1.msra.mxu0 0.0
        %993 = vmatprep.subr.mxu0 0.0
        %994 = vmatpush1.msra.mxu0 0.0
        %995 = vmatprep.subr.mxu0 0.0
        %996 = vmatpush1.msra.mxu0 0.0
        %997 = vmatprep.subr.mxu0 0.0
        %998 = vmatpush1.msra.mxu0 0.0
        %999 = vmatprep.subr.mxu0 0.0
        %1000 = vmatpush1.msra.mxu0 0.0
        %1001 = vmatprep.subr.mxu0 0.0
        %1002 = vmatpush1.msra.mxu0 0.0
        %1003 = vmatprep.subr.mxu0 0.0
        %1004 = vmatpush1.msra.mxu0 0.0
        %1005 = vmatprep.subr.mxu0 0.0
        %1006 = vmatpush1.msra.mxu0 0.0
        %1007 = vmatprep.subr.mxu0 0.0
        %1008 = vmatpush1.msra.mxu0 0.0
        %1009 = vmatprep.subr.mxu0 0.0
        %1010 = vmatpush1.msra.mxu0 0.0
        %1011 = vmatprep.mubr.f32.mxu0 0.0
        %1012 = vmatmul.mubr.f32.gmra.mrb[0].mxu0 %v724
        %v1013 = vpop.f32.mrb[0].mxu0
        %v1014 = vadd.f32 0.0, %v1013
        %v1015 = vpop.f32.mrb[0].mxu0
        %1016 = vdwg.mxu0
        %v1017 = vmul.f32 %v570, %v872
        %v1018 = vmul.f32 %v572, %v874
        %v1019 = vmul.f32 %v641, %v943
        %v1020 = vmul.f32 %v643, %v945
        %v1021 = vmul.f32 %v712, %v1014
        %v1022 = vld [vmem:[%s4] sm:$0xff]
        %v1023 = vld [vmem:[%s4 + $0x8] sm:$0xff]
        %v1024 = vld [vmem:[%s4 + $0x10] sm:$0xff]
        %v1025 = vld [vmem:[%s4 + $0x18] sm:$0xff]
        %v1026 = vld [vmem:[%s4 + $0x20] sm:$0xff]
        %v1027 = vld [vmem:[%s4 + $0x28] sm:$0xff]
        %v1028 = vld [vmem:[%s4 + $0x30] sm:$0xff]
        %v1029 = vld [vmem:[%s4 + $0x38] sm:$0xff]
        %v1030 = vld [vmem:[%s4 + $0x40] sm:$0xff]
        %v1031 = vld [vmem:[%s4 + $0x48] sm:$0xff]
        %v1032 = vld [vmem:[%s4 + $0x50] sm:$0xff]
        %v1033 = vld [vmem:[%s4 + $0x58] sm:$0xff]
        %v1034 = vld [vmem:[%s4 + $0x60] sm:$0xff]
        %v1035 = vld [vmem:[%s4 + $0x68] sm:$0xff]
        %v1036 = vld [vmem:[%s4 + $0x70] sm:$0xff]
        %v1037 = vld [vmem:[%s4 + $0x78] sm:$0xff]
        %v1038 = vld [vmem:[%s4 + $0x80] sm:$0xff]
        %v1039 = vld [vmem:[%s4 + $0x88] sm:$0xff]
        %v1040 = vld [vmem:[%s4 + $0x90] sm:$0xff]
        %v1041 = vld [vmem:[%s4 + $0x98] sm:$0xff]
        %v1042 = vld [vmem:[%s4 + $0xa0] sm:$0xff]
        %v1043 = vld [vmem:[%s4 + $0xa8] sm:$0xff]
        %v1044 = vld [vmem:[%s4 + $0xb0] sm:$0xff]
        %v1045 = vld [vmem:[%s4 + $0xb8] sm:$0xff]
        %v1046 = vld [vmem:[%s4 + $0xc0] sm:$0xff]
        %v1047 = vld [vmem:[%s4 + $0xc8] sm:$0xff]
        %v1048 = vld [vmem:[%s4 + $0xd0] sm:$0xff]
        %v1049 = vld [vmem:[%s4 + $0xd8] sm:$0xff]
        %v1050 = vld [vmem:[%s4 + $0xe0] sm:$0xff]
        %v1051 = vld [vmem:[%s4 + $0xe8] sm:$0xff]
        %v1052 = vld [vmem:[%s4 + $0xf0] sm:$0xff]
        %v1053 = vld [vmem:[%s4 + $0xf8] sm:$0xff]
        %v1054 = vld [vmem:[%s4 + $0x100] sm:$0xff]
        %v1055 = vld [vmem:[%s4 + $0x108] sm:$0xff]
        %v1056 = vld [vmem:[%s4 + $0x110] sm:$0xff]
        %v1057 = vld [vmem:[%s4 + $0x118] sm:$0xff]
        %v1058 = vld [vmem:[%s4 + $0x120] sm:$0xff]
        %v1059 = vld [vmem:[%s4 + $0x128] sm:$0xff]
        %v1060 = vld [vmem:[%s4 + $0x130] sm:$0xff]
        %v1061 = vld [vmem:[%s4 + $0x138] sm:$0xff]
        %v1062 = vld [vmem:[%s4 + $0x140] sm:$0xff]
        %v1063 = vld [vmem:[%s4 + $0x148] sm:$0xff]
        %v1064 = vld [vmem:[%s4 + $0x150] sm:$0xff]
        %v1065 = vld [vmem:[%s4 + $0x158] sm:$0xff]
        %v1066 = vld [vmem:[%s4 + $0x160] sm:$0xff]
        %v1067 = vld [vmem:[%s4 + $0x168] sm:$0xff]
        %v1068 = vld [vmem:[%s4 + $0x170] sm:$0xff]
        %v1069 = vld [vmem:[%s4 + $0x178] sm:$0xff]
        %v1070 = vld [vmem:[%s4 + $0x180] sm:$0xff]
        %v1071 = vld [vmem:[%s4 + $0x188] sm:$0xff]
        %v1072 = vld [vmem:[%s4 + $0x190] sm:$0xff]
        %v1073 = vld [vmem:[%s4 + $0x198] sm:$0xff]
        %v1074 = vld [vmem:[%s4 + $0x1a0] sm:$0xff]
        %v1075 = vld [vmem:[%s4 + $0x1a8] sm:$0xff]
        %v1076 = vld [vmem:[%s4 + $0x1b0] sm:$0xff]
        %v1077 = vld [vmem:[%s4 + $0x1b8] sm:$0xff]
        %v1078 = vld [vmem:[%s4 + $0x1c0] sm:$0xff]
        %v1079 = vld [vmem:[%s4 + $0x1c8] sm:$0xff]
        %v1080 = vld [vmem:[%s4 + $0x1d0] sm:$0xff]
        %v1081 = vld [vmem:[%s4 + $0x1d8] sm:$0xff]
        %v1082 = vld [vmem:[%s4 + $0x1e0] sm:$0xff]
        %v1083 = vld [vmem:[%s4 + $0x1e8] sm:$0xff]
        %v1084 = vld [vmem:[%s4 + $0x1f0] sm:$0xff]
        %v1085 = vld [vmem:[%s4 + $0x1f8] sm:$0xff]
        %v1086 = vld [vmem:[%s4 + $0x200] sm:$0xff]
        %v1087 = vld [vmem:[%s4 + $0x208] sm:$0xff]
        %v1088 = vld [vmem:[%s4 + $0x210] sm:$0xff]
        %v1089 = vld [vmem:[%s4 + $0x218] sm:$0xff]
        %v1090 = vld [vmem:[%s4 + $0x220] sm:$0xff]
        %v1091 = vld [vmem:[%s4 + $0x228] sm:$0xff]
        %v1092 = vld [vmem:[%s4 + $0x230] sm:$0xff]
        %v1093 = vld [vmem:[%s4 + $0x238] sm:$0xff]
        %v1094 = vld [vmem:[%s4 + $0x240] sm:$0xff]
        %v1095 = vld [vmem:[%s4 + $0x248] sm:$0xff]
        %v1096 = vld [vmem:[%s4 + $0x250] sm:$0xff]
        %v1097 = vld [vmem:[%s4 + $0x258] sm:$0xff]
        %v1098 = vld [vmem:[%s4 + $0x260] sm:$0xff]
        %v1099 = vld [vmem:[%s4 + $0x268] sm:$0xff]
        %v1100 = vld [vmem:[%s4 + $0x270] sm:$0xff]
        %v1101 = vld [vmem:[%s4 + $0x278] sm:$0xff]
        %v1102 = vld [vmem:[%s5] sm:$0x1]
        %v1104 = vlaneseq
        %v1105 = vshrl.u32 %v1104, 7
        %v1106 = vsub.s32 0, %v1105
        %v1107 = vrot.slane %v1102, %v1106
        %1109 = vmatprep.subr.mxu0 0.0
        %1110 = vmatpush1.msra.mxu0 %v1022
        %1111 = vmatprep.subr.mxu0 0.0
        %1112 = vmatpush1.msra.mxu0 %v1023
        %1113 = vmatprep.subr.mxu0 0.0
        %1114 = vmatpush1.msra.mxu0 %v1024
        %1115 = vmatprep.subr.mxu0 0.0
        %1116 = vmatpush1.msra.mxu0 %v1025
        %1117 = vmatprep.subr.mxu0 0.0
        %1118 = vmatpush1.msra.mxu0 %v1026
        %1119 = vmatprep.subr.mxu0 0.0
        %1120 = vmatpush1.msra.mxu0 %v1027
        %1121 = vmatprep.subr.mxu0 0.0
        %1122 = vmatpush1.msra.mxu0 %v1028
        %1123 = vmatprep.subr.mxu0 0.0
        %1124 = vmatpush1.msra.mxu0 %v1029
        %1125 = vmatprep.subr.mxu0 0.0
        %1126 = vmatpush1.msra.mxu0 %v1030
        %1127 = vmatprep.subr.mxu0 0.0
        %1128 = vmatpush1.msra.mxu0 %v1031
        %1129 = vmatprep.subr.mxu0 0.0
        %1130 = vmatpush1.msra.mxu0 %v1032
        %1131 = vmatprep.subr.mxu0 0.0
        %1132 = vmatpush1.msra.mxu0 %v1033
        %1133 = vmatprep.subr.mxu0 0.0
        %1134 = vmatpush1.msra.mxu0 %v1034
        %1135 = vmatprep.subr.mxu0 0.0
        %1136 = vmatpush1.msra.mxu0 %v1035
        %1137 = vmatprep.subr.mxu0 0.0
        %1138 = vmatpush1.msra.mxu0 %v1036
        %1139 = vmatprep.subr.mxu0 0.0
        %1140 = vmatpush1.msra.mxu0 %v1037
        %1141 = vmatprep.subr.mxu0 0.0
        %1142 = vmatpush1.msra.mxu0 %v1038
        %1143 = vmatprep.subr.mxu0 0.0
        %1144 = vmatpush1.msra.mxu0 %v1039
        %1145 = vmatprep.subr.mxu0 0.0
        %1146 = vmatpush1.msra.mxu0 %v1040
        %1147 = vmatprep.subr.mxu0 0.0
        %1148 = vmatpush1.msra.mxu0 %v1041
        %1149 = vmatprep.subr.mxu0 0.0
        %1150 = vmatpush1.msra.mxu0 %v1042
        %1151 = vmatprep.subr.mxu0 0.0
        %1152 = vmatpush1.msra.mxu0 %v1043
        %1153 = vmatprep.subr.mxu0 0.0
        %1154 = vmatpush1.msra.mxu0 %v1044
        %1155 = vmatprep.subr.mxu0 0.0
        %1156 = vmatpush1.msra.mxu0 %v1045
        %1157 = vmatprep.subr.mxu0 0.0
        %1158 = vmatpush1.msra.mxu0 %v1046
        %1159 = vmatprep.subr.mxu0 0.0
        %1160 = vmatpush1.msra.mxu0 %v1047
        %1161 = vmatprep.subr.mxu0 0.0
        %1162 = vmatpush1.msra.mxu0 %v1048
        %1163 = vmatprep.subr.mxu0 0.0
        %1164 = vmatpush1.msra.mxu0 %v1049
        %1165 = vmatprep.subr.mxu0 0.0
        %1166 = vmatpush1.msra.mxu0 %v1050
        %1167 = vmatprep.subr.mxu0 0.0
        %1168 = vmatpush1.msra.mxu0 %v1051
        %1169 = vmatprep.subr.mxu0 0.0
        %1170 = vmatpush1.msra.mxu0 %v1052
        %1171 = vmatprep.subr.mxu0 0.0
        %1172 = vmatpush1.msra.mxu0 %v1053
        %1173 = vmatprep.mubr.f32.mxu0 %v1018
        %1174 = vmatmul.mubr.f32.gmra.mrb[0].mxu0 %v1017
        %v1175 = vpop.f32.mrb[0].mxu0
        %v1176 = vadd.f32 %v1107, %v1175
        %v1177 = vpop.f32.mrb[0].mxu0
        %1178 = vdwg.mxu0
        %1179 = vmatprep.subr.mxu0 0.0
        %1180 = vmatpush1.msra.mxu0 %v1054
        %1181 = vmatprep.subr.mxu0 0.0
        %1182 = vmatpush1.msra.mxu0 %v1055
        %1183 = vmatprep.subr.mxu0 0.0
        %1184 = vmatpush1.msra.mxu0 %v1056
        %1185 = vmatprep.subr.mxu0 0.0
        %1186 = vmatpush1.msra.mxu0 %v1057
        %1187 = vmatprep.subr.mxu0 0.0
        %1188 = vmatpush1.msra.mxu0 %v1058
        %1189 = vmatprep.subr.mxu0 0.0
        %1190 = vmatpush1.msra.mxu0 %v1059
        %1191 = vmatprep.subr.mxu0 0.0
        %1192 = vmatpush1.msra.mxu0 %v1060
        %1193 = vmatprep.subr.mxu0 0.0
        %1194 = vmatpush1.msra.mxu0 %v1061
        %1195 = vmatprep.subr.mxu0 0.0
        %1196 = vmatpush1.msra.mxu0 %v1062
        %1197 = vmatprep.subr.mxu0 0.0
        %1198 = vmatpush1.msra.mxu0 %v1063
        %1199 = vmatprep.subr.mxu0 0.0
        %1200 = vmatpush1.msra.mxu0 %v1064
        %1201 = vmatprep.subr.mxu0 0.0
        %1202 = vmatpush1.msra.mxu0 %v1065
        %1203 = vmatprep.subr.mxu0 0.0
        %1204 = vmatpush1.msra.mxu0 %v1066
        %1205 = vmatprep.subr.mxu0 0.0
        %1206 = vmatpush1.msra.mxu0 %v1067
        %1207 = vmatprep.subr.mxu0 0.0
        %1208 = vmatpush1.msra.mxu0 %v1068
        %1209 = vmatprep.subr.mxu0 0.0
        %1210 = vmatpush1.msra.mxu0 %v1069
        %1211 = vmatprep.subr.mxu0 0.0
        %1212 = vmatpush1.msra.mxu0 %v1070
        %1213 = vmatprep.subr.mxu0 0.0
        %1214 = vmatpush1.msra.mxu0 %v1071
        %1215 = vmatprep.subr.mxu0 0.0
        %1216 = vmatpush1.msra.mxu0 %v1072
        %1217 = vmatprep.subr.mxu0 0.0
        %1218 = vmatpush1.msra.mxu0 %v1073
        %1219 = vmatprep.subr.mxu0 0.0
        %1220 = vmatpush1.msra.mxu0 %v1074
        %1221 = vmatprep.subr.mxu0 0.0
        %1222 = vmatpush1.msra.mxu0 %v1075
        %1223 = vmatprep.subr.mxu0 0.0
        %1224 = vmatpush1.msra.mxu0 %v1076
        %1225 = vmatprep.subr.mxu0 0.0
        %1226 = vmatpush1.msra.mxu0 %v1077
        %1227 = vmatprep.subr.mxu0 0.0
        %1228 = vmatpush1.msra.mxu0 %v1078
        %1229 = vmatprep.subr.mxu0 0.0
        %1230 = vmatpush1.msra.mxu0 %v1079
        %1231 = vmatprep.subr.mxu0 0.0
        %1232 = vmatpush1.msra.mxu0 %v1080
        %1233 = vmatprep.subr.mxu0 0.0
        %1234 = vmatpush1.msra.mxu0 %v1081
        %1235 = vmatprep.subr.mxu0 0.0
        %1236 = vmatpush1.msra.mxu0 %v1082
        %1237 = vmatprep.subr.mxu0 0.0
        %1238 = vmatpush1.msra.mxu0 %v1083
        %1239 = vmatprep.subr.mxu0 0.0
        %1240 = vmatpush1.msra.mxu0 %v1084
        %1241 = vmatprep.subr.mxu0 0.0
        %1242 = vmatpush1.msra.mxu0 %v1085
        %1243 = vmatprep.mubr.f32.mxu0 %v1020
        %1244 = vmatmul.mubr.f32.gmra.mrb[0].mxu0 %v1019
        %v1245 = vpop.f32.mrb[0].mxu0
        %v1246 = vadd.f32 %v1176, %v1245
        %v1247 = vpop.f32.mrb[0].mxu0
        %1248 = vdwg.mxu0
        %1249 = vmatprep.subr.mxu0 0.0
        %1250 = vmatpush1.msra.mxu0 %v1086
        %1251 = vmatprep.subr.mxu0 0.0
        %1252 = vmatpush1.msra.mxu0 %v1087
        %1253 = vmatprep.subr.mxu0 0.0
        %1254 = vmatpush1.msra.mxu0 %v1088
        %1255 = vmatprep.subr.mxu0 0.0
        %1256 = vmatpush1.msra.mxu0 %v1089
        %1257 = vmatprep.subr.mxu0 0.0
        %1258 = vmatpush1.msra.mxu0 %v1090
        %1259 = vmatprep.subr.mxu0 0.0
        %1260 = vmatpush1.msra.mxu0 %v1091
        %1261 = vmatprep.subr.mxu0 0.0
        %1262 = vmatpush1.msra.mxu0 %v1092
        %1263 = vmatprep.subr.mxu0 0.0
        %1264 = vmatpush1.msra.mxu0 %v1093
        %1265 = vmatprep.subr.mxu0 0.0
        %1266 = vmatpush1.msra.mxu0 %v1094
        %1267 = vmatprep.subr.mxu0 0.0
        %1268 = vmatpush1.msra.mxu0 %v1095
        %1269 = vmatprep.subr.mxu0 0.0
        %1270 = vmatpush1.msra.mxu0 %v1096
        %1271 = vmatprep.subr.mxu0 0.0
        %1272 = vmatpush1.msra.mxu0 %v1097
        %1273 = vmatprep.subr.mxu0 0.0
        %1274 = vmatpush1.msra.mxu0 %v1098
        %1275 = vmatprep.subr.mxu0 0.0
        %1276 = vmatpush1.msra.mxu0 %v1099
        %1277 = vmatprep.subr.mxu0 0.0
        %1278 = vmatpush1.msra.mxu0 %v1100
        %1279 = vmatprep.subr.mxu0 0.0
        %1280 = vmatpush1.msra.mxu0 %v1101
        %1281 = vmatprep.subr.mxu0 0.0
        %1282 = vmatpush1.msra.mxu0 0.0
        %1283 = vmatprep.subr.mxu0 0.0
        %1284 = vmatpush1.msra.mxu0 0.0
        %1285 = vmatprep.subr.mxu0 0.0
        %1286 = vmatpush1.msra.mxu0 0.0
        %1287 = vmatprep.subr.mxu0 0.0
        %1288 = vmatpush1.msra.mxu0 0.0
        %1289 = vmatprep.subr.mxu0 0.0
        %1290 = vmatpush1.msra.mxu0 0.0
        %1291 = vmatprep.subr.mxu0 0.0
        %1292 = vmatpush1.msra.mxu0 0.0
        %1293 = vmatprep.subr.mxu0 0.0
        %1294 = vmatpush1.msra.mxu0 0.0
        %1295 = vmatprep.subr.mxu0 0.0
        %1296 = vmatpush1.msra.mxu0 0.0
        %1297 = vmatprep.subr.mxu0 0.0
        %1298 = vmatpush1.msra.mxu0 0.0
        %1299 = vmatprep.subr.mxu0 0.0
        %1300 = vmatpush1.msra.mxu0 0.0
        %1301 = vmatprep.subr.mxu0 0.0
        %1302 = vmatpush1.msra.mxu0 0.0
        %1303 = vmatprep.subr.mxu0 0.0
        %1304 = vmatpush1.msra.mxu0 0.0
        %1305 = vmatprep.subr.mxu0 0.0
        %1306 = vmatpush1.msra.mxu0 0.0
        %1307 = vmatprep.subr.mxu0 0.0
        %1308 = vmatpush1.msra.mxu0 0.0
        %1309 = vmatprep.subr.mxu0 0.0
        %1310 = vmatpush1.msra.mxu0 0.0
        %1311 = vmatprep.subr.mxu0 0.0
        %1312 = vmatpush1.msra.mxu0 0.0
        %1313 = vmatprep.mubr.f32.mxu0 0.0
        %1314 = vmatmul.mubr.f32.gmra.mrb[0].mxu0 %v1021
        %v1315 = vpop.f32.mrb[0].mxu0
        %v1316 = vadd.f32 %v1246, %v1315
        %v1317 = vpop.f32.mrb[0].mxu0
        %1318 = vdwg.mxu0
        %1319 = vst.msk [vmem:[%s402] sm:$0xff] %vm499, %v1316
        %1320 = vst [vmem:[%s409] sm:$0xff] %v570
        %1321 = vst [vmem:[%s416] sm:$0xff] %v572
        %1322 = vst [vmem:[%s423] sm:$0xff] %v641
        %1323 = vst [vmem:[%s430] sm:$0xff] %v643
        %1324 = vst [vmem:[%s437] sm:$0xff] %v712
        %s1325 = sand.u32 %s175, 1
        %s1326 = scalar_lea.sflag [#allocation4], %s1325
        %s1327 = sand.u32 %s175, 1
        %s1328 = smul.addr %s1327, 8
        %s1329 = scalar_lea.vmem [#allocation5], %s1328
        %s1330 = sand.u32 %s36, 1
        %s1331 = scalar_lea.sflag [#allocation7], %s1330
        %s1332 = sand.u32 %s201, 1
        %s1333 = smul.addr %s1332, 8
        %s1334 = scalar_lea.vmem [#allocation6], %s1333
        %s1335 = sand.u32 %s36, 1
        %s1336 = scalar_lea.sflag [#allocation7], %s1335
        %s1337 = sand.u32 %s227, 1
        %s1338 = smul.addr %s1337, 8
        %s1339 = scalar_lea.vmem [#allocation8], %s1338
        %s1340 = sand.u32 %s36, 1
        %s1341 = scalar_lea.sflag [#allocation10], %s1340
        %s1342 = sand.u32 %s253, 1
        %s1343 = smul.addr %s1342, 8
        %s1344 = scalar_lea.vmem [#allocation9], %s1343
        %s1345 = sand.u32 %s36, 1
        %s1346 = scalar_lea.sflag [#allocation10], %s1345
        %s1347 = sand.u32 %s279, 1
        %s1348 = smul.addr %s1347, 8
        %s1349 = scalar_lea.vmem [#allocation11], %s1348
        %s1350 = sand.u32 %s305, 1
        %s1351 = scalar_lea.sflag [#allocation13], %s1350
        %s1352 = sand.u32 %s305, 1
        %s1353 = smul.addr %s1352, 8
        %s1354 = scalar_lea.vmem [#allocation12], %s1353
        // Predicated region
        $region49: #{tpu_custom_call.1} parent=43 // pred_check
          %p1355 = pneg %p185
        $region50: #{tpu_custom_call.1} parent=43 // pred_check_branch
          %1357 = sbr.rel (%p1355) target = $region52
        $region51: #{tpu_custom_call.1} parent=43 // pred_region
          %s1359 = ssub.s32 128, 128
          %1360 = vsyncadd %s1326, %s1359
          %s1361 = smul.addr %s36, 128
          %s1362 = scalar_lea.hbm %s6, %s1361
          %s1364 = sshll.u32 %s1329, 4
          %s1365 = int_to_ptr.vmem [resolvable:$true] %s1364
          %1367 = dma.vmem_to_hbm [thread:$0]  %s1365, 128, %s1362, %s1326
        $region52: #{tpu_custom_call.1} parent=43 // pred_fallthru
          _
        // Predicated region
        $region53: #{tpu_custom_call.1} parent=43 // pred_check
          %p1368 = pneg %p211
        $region54: #{tpu_custom_call.1} parent=43 // pred_check_branch
          %1370 = sbr.rel (%p1368) target = $region56
        $region55: #{tpu_custom_call.1} parent=43 // pred_region
          %s1372 = ssub.s32 128, 128
          %1373 = vsyncadd %s1331, %s1372
          %s1374 = smul.addr %s36, 128
          %s1375 = scalar_lea.hbm %s7, %s1374
          %s1377 = sshll.u32 %s1334, 4
          %s1378 = int_to_ptr.vmem [resolvable:$true] %s1377
          %1380 = dma.vmem_to_hbm [thread:$0]  %s1378, 128, %s1375, %s1331
        $region56: #{tpu_custom_call.1} parent=43 // pred_fallthru
          _
        // Predicated region
        $region57: #{tpu_custom_call.1} parent=43 // pred_check
          %p1381 = pneg %p237
        $region58: #{tpu_custom_call.1} parent=43 // pred_check_branch
          %1383 = sbr.rel (%p1381) target = $region60
        $region59: #{tpu_custom_call.1} parent=43 // pred_region
          %s1385 = ssub.s32 128, 128
          %1386 = vsyncadd %s1336, %s1385
          %s1387 = smul.addr %s36, 128
          %s1388 = scalar_lea.hbm %s8, %s1387
          %s1390 = sshll.u32 %s1339, 4
          %s1391 = int_to_ptr.vmem [resolvable:$true] %s1390
          %1393 = dma.vmem_to_hbm [thread:$0]  %s1391, 128, %s1388, %s1336
        $region60: #{tpu_custom_call.1} parent=43 // pred_fallthru
          _
        // Predicated region
        $region61: #{tpu_custom_call.1} parent=43 // pred_check
          %p1394 = pneg %p263
        $region62: #{tpu_custom_call.1} parent=43 // pred_check_branch
          %1396 = sbr.rel (%p1394) target = $region64
        $region63: #{tpu_custom_call.1} parent=43 // pred_region
          %s1398 = ssub.s32 128, 128
          %1399 = vsyncadd %s1341, %s1398
          %s1400 = smul.addr %s36, 128
          %s1401 = scalar_lea.hbm %s9, %s1400
          %s1403 = sshll.u32 %s1344, 4
          %s1404 = int_to_ptr.vmem [resolvable:$true] %s1403
          %1406 = dma.vmem_to_hbm [thread:$0]  %s1404, 128, %s1401, %s1341
        $region64: #{tpu_custom_call.1} parent=43 // pred_fallthru
          _
        // Predicated region
        $region65: #{tpu_custom_call.1} parent=43 // pred_check
          %p1407 = pneg %p289
        $region66: #{tpu_custom_call.1} parent=43 // pred_check_branch
          %1409 = sbr.rel (%p1407) target = $region68
        $region67: #{tpu_custom_call.1} parent=43 // pred_region
          %s1411 = ssub.s32 128, 128
          %1412 = vsyncadd %s1346, %s1411
          %s1413 = smul.addr %s36, 128
          %s1414 = scalar_lea.hbm %s10, %s1413
          %s1416 = sshll.u32 %s1349, 4
          %s1417 = int_to_ptr.vmem [resolvable:$true] %s1416
          %1419 = dma.vmem_to_hbm [thread:$0]  %s1417, 128, %s1414, %s1346
        $region68: #{tpu_custom_call.1} parent=43 // pred_fallthru
          _
        // Predicated region
        $region69: #{tpu_custom_call.1} parent=43 // pred_check
          %p1420 = pneg %p315
        $region70: #{tpu_custom_call.1} parent=43 // pred_check_branch
          %1422 = sbr.rel (%p1420) target = $region72
        $region71: #{tpu_custom_call.1} parent=43 // pred_region
          %s1424 = ssub.s32 128, 128
          %1425 = vsyncadd %s1351, %s1424
          %s1426 = smul.addr %s36, 128
          %s1427 = scalar_lea.hbm %s11, %s1426
          %s1429 = sshll.u32 %s1354, 4
          %s1430 = int_to_ptr.vmem [resolvable:$true] %s1429
          %1432 = dma.vmem_to_hbm [thread:$0]  %s1430, 128, %s1427, %s1351
        $region72: #{tpu_custom_call.1} parent=43 // pred_fallthru
          _
      $region44: #{tpu_custom_call.1} parent=5 // pred_fallthru
        _
      %p1433 = scmp.le.s32.totalorder 2, %s31
      // Predicated region
      $region73: #{tpu_custom_call.1} parent=5 // pred_check
        %p1434 = pneg %p1433
      $region74: #{tpu_custom_call.1} parent=5 // pred_check_branch
        %1436 = sbr.rel (%p1434) target = $region76
      $region75: #{tpu_custom_call.1} parent=5 // pred_region
        %s1437 = ssub.s32 %s31, 2
        // Predicated region
        $region77: #{tpu_custom_call.1} parent=75 // pred_check
          %p1438 = pneg %p191
        $region78: #{tpu_custom_call.1} parent=75 // pred_check_branch
          %1440 = sbr.rel (%p1438) target = $region80
        $region79: #{tpu_custom_call.1} parent=75 // pred_region
          %s1441 = sand.u32 %s176, 1
          %s1442 = scalar_lea.sflag [#allocation4], %s1441
          %s1443 = sand.u32 %s176, 1
          %s1444 = smul.addr %s1443, 8
          %s1445 = scalar_lea.vmem [#allocation5], %s1444
          %1446 = dma.done %s1442, 128
        $region80: #{tpu_custom_call.1} parent=75 // pred_fallthru
          _
        // Predicated region
        $region81: #{tpu_custom_call.1} parent=75 // pred_check
          %p1447 = pneg %p217
        $region82: #{tpu_custom_call.1} parent=75 // pred_check_branch
          %1449 = sbr.rel (%p1447) target = $region84
        $region83: #{tpu_custom_call.1} parent=75 // pred_region
          %s1450 = sand.u32 %s37, 1
          %s1451 = scalar_lea.sflag [#allocation7], %s1450
          %s1452 = sand.u32 %s202, 1
          %s1453 = smul.addr %s1452, 8
          %s1454 = scalar_lea.vmem [#allocation6], %s1453
          %1455 = dma.done %s1451, 128
        $region84: #{tpu_custom_call.1} parent=75 // pred_fallthru
          _
        // Predicated region
        $region85: #{tpu_custom_call.1} parent=75 // pred_check
          %p1456 = pneg %p243
        $region86: #{tpu_custom_call.1} parent=75 // pred_check_branch
          %1458 = sbr.rel (%p1456) target = $region88
        $region87: #{tpu_custom_call.1} parent=75 // pred_region
          %s1459 = sand.u32 %s37, 1
          %s1460 = scalar_lea.sflag [#allocation7], %s1459
          %s1461 = sand.u32 %s228, 1
          %s1462 = smul.addr %s1461, 8
          %s1463 = scalar_lea.vmem [#allocation8], %s1462
          %1464 = dma.done %s1460, 128
        $region88: #{tpu_custom_call.1} parent=75 // pred_fallthru
          _
        // Predicated region
        $region89: #{tpu_custom_call.1} parent=75 // pred_check
          %p1465 = pneg %p269
        $region90: #{tpu_custom_call.1} parent=75 // pred_check_branch
          %1467 = sbr.rel (%p1465) target = $region92
        $region91: #{tpu_custom_call.1} parent=75 // pred_region
          %s1468 = sand.u32 %s37, 1
          %s1469 = scalar_lea.sflag [#allocation10], %s1468
          %s1470 = sand.u32 %s254, 1
          %s1471 = smul.addr %s1470, 8
          %s1472 = scalar_lea.vmem [#allocation9], %s1471
          %1473 = dma.done %s1469, 128
        $region92: #{tpu_custom_call.1} parent=75 // pred_fallthru
          _
        // Predicated region
        $region93: #{tpu_custom_call.1} parent=75 // pred_check
          %p1474 = pneg %p295
        $region94: #{tpu_custom_call.1} parent=75 // pred_check_branch
          %1476 = sbr.rel (%p1474) target = $region96
        $region95: #{tpu_custom_call.1} parent=75 // pred_region
          %s1477 = sand.u32 %s37, 1
          %s1478 = scalar_lea.sflag [#allocation10], %s1477
          %s1479 = sand.u32 %s280, 1
          %s1480 = smul.addr %s1479, 8
          %s1481 = scalar_lea.vmem [#allocation11], %s1480
          %1482 = dma.done %s1478, 128
        $region96: #{tpu_custom_call.1} parent=75 // pred_fallthru
          _
        // Predicated region
        $region97: #{tpu_custom_call.1} parent=75 // pred_check
          %p1483 = pneg %p321
        $region98: #{tpu_custom_call.1} parent=75 // pred_check_branch
          %1485 = sbr.rel (%p1483) target = $region100
        $region99: #{tpu_custom_call.1} parent=75 // pred_region
          %s1486 = sand.u32 %s306, 1
          %s1487 = scalar_lea.sflag [#allocation13], %s1486
          %s1488 = sand.u32 %s306, 1
          %s1489 = smul.addr %s1488, 8
          %s1490 = scalar_lea.vmem [#allocation12], %s1489
          %1491 = dma.done %s1487, 128
        $region100: #{tpu_custom_call.1} parent=75 // pred_fallthru
          _
      $region76: #{tpu_custom_call.1} parent=5 // pred_fallthru
        _
    $region6: #{tpu_custom_call.1} parent=1 // loop_footer
      %s35 = sadd.s32 1, %s31
    $region7: #{tpu_custom_call.1} parent=1 // loop_footer_branch
      %30 = sbr.rel target = $region3
    $region8: #{tpu_custom_call.1} parent=1 // loop_exit
      _
    %1492 = vsyncpa [#allocation3], 1
    %s1493 = scalar_lea.sflag [#allocation3], 1
    %1494 = vsyncpa %s1493, 1
    %1495 = vsyncpa [#allocation4], 1
    %s1496 = scalar_lea.sflag [#allocation4], 1
    %1497 = vsyncpa %s1496, 1
    %1498 = vsyncpa [#allocation7], 1
    %s1499 = scalar_lea.sflag [#allocation7], 1
    %1500 = vsyncpa %s1499, 1
    %1501 = vsyncpa [#allocation10], 1
    %s1502 = scalar_lea.sflag [#allocation10], 1
    %1503 = vsyncpa %s1502, 1
    %1504 = vsyncpa [#allocation13], 1
    %s1505 = scalar_lea.sflag [#allocation13], 1
    %1506 = vsyncpa %s1505, 1

</llo_original>
